<compile_context>
chip_gen: v6e
topology: v6e:2x2x1
jax: 0.10.0
libtpu: 0.0.40
codegen_flags: <defaults>
</compile_context>

<pallas_src>
import math
import functools

import jax
import jax.numpy as jnp
from jax import lax
from jax.experimental import pallas as pl
from jax.experimental.pallas import tpu as pltpu


def mha_kernel(x_ref, w_qkv_ref, b_qkv_ref, wp_ref, bp_ref, o_ref,
               k_scr, v_scr, acc_ref, *,
               num_heads: int, emb_size: int, q_tile: int, compute_dtype):
    """One (batch, query-tile) grid step.

    x_ref    : (N, E)    VMEM  full sequence of this batch element (compute_dtype)
    w_qkv_ref: (E, 3E)   VMEM  fused, pre-transposed (in,out) QKV weight,
                               softmax scale folded into the Q third
    b_qkv_ref: (1, 3E)   VMEM  fused bias (Q part pre-scaled), f32
    wp_ref   : (E, E)    VMEM  pre-transposed (in,out) output projection
    bp_ref   : (1, E)    VMEM  f32
    o_ref    : (1, tq, E) VMEM output rows (original dtype)
    k_scr    : (N, E)    VMEM scratch, compute_dtype (persistent across qi)
    v_scr    : (N, E)    VMEM scratch, compute_dtype (persistent across qi)
    acc_ref  : (tq, E)   VMEM scratch, f32 (head-output gather)
    """
    E = emb_size
    H = num_heads
    D = E // H
    tq = q_tile
    cd = compute_dtype
    exact_div = jnp.dtype(cd) == jnp.dtype(jnp.float32)

    qi = pl.program_id(1)

    # ---- K/V projection: once per batch element (qi is inner + sequential). ----
    @pl.when(qi == 0)
    def _():
        kv = jnp.dot(x_ref[...], w_qkv_ref[:, E:3 * E],
                     preferred_element_type=jnp.float32) + b_qkv_ref[:, E:3 * E]
        k_scr[...] = kv[:, 0:E].astype(cd)
        v_scr[...] = kv[:, E:2 * E].astype(cd)

    # ---- Q projection for this query tile (sliced from the full-sequence block). --
    q_start = pl.multiple_of(qi * tq, tq)
    x_q = x_ref[pl.ds(q_start, tq), :]                                    # (tq, E)
    q = jnp.dot(x_q, w_qkv_ref[:, 0:E],
                preferred_element_type=jnp.float32) + b_qkv_ref[:, 0:E]   # (tq, E) f32

    # ---- Per-head attention; heads unrolled statically (small H, D < 128 so the
    #      attention core is EUP/VPU-bound: keep it relayout-free). ----
    for h in range(H):
        lo, hi = h * D, (h + 1) * D
        qh = q[:, lo:hi].astype(cd)     # (tq, D)  cast only the slice we need
        kh = k_scr[:, lo:hi]            # (N, D)   already compute_dtype
        vh = v_scr[:, lo:hi]            # (N, D)

        # energy = q @ k^T without an explicit transpose: contract over D.
        energy = lax.dot_general(qh, kh, (((1,), (1,)), ((), ())),
                                 preferred_element_type=jnp.float32)      # (tq, N)

        # Numerically stable softmax (1/sqrt(E) scale already folded into q).
        m = jnp.max(energy, axis=-1, keepdims=True)
        p = jnp.exp(energy - m)
        s = jnp.sum(p, axis=-1, keepdims=True)
        if exact_div:
            att = p / s
        else:
            att = p * pl.reciprocal(s, approx=True)

        head_out = jnp.dot(att.astype(cd), vh,
                           preferred_element_type=jnp.float32)            # (tq, D)
        # Scatter into scratch at a static lane offset (f32 MXU output, cast once below).
        acc_ref[:, lo:hi] = head_out

    # ---- Single full-width, lane-dense output projection. ----
    out = jnp.dot(acc_ref[...].astype(cd), wp_ref[...],
                  preferred_element_type=jnp.float32) + bp_ref[...]
    o_ref[0] = out.astype(o_ref.dtype)


def multi_head_attention(x, params, *, num_heads: int, compute_dtype=jnp.bfloat16):
    """x: (B, N, E).  params: dict of PyTorch-layout weights/biases.

    compute_dtype controls the MXU operand dtype (bf16 default: ~4x MXU throughput
    on v6e/v7x and half the VMEM/HBM for x).  Accumulation is always f32.
    """
    B, N, E = x.shape
    H = num_heads
    assert E % H == 0, "emb_size must be divisible by num_heads"

    out_dtype = x.dtype
    cd_bytes = jnp.dtype(compute_dtype).itemsize

    # braindecode scales energies by sqrt(emb_size) (not sqrt(head_dim)).
    scale = 1.0 / math.sqrt(E)

    # PyTorch (out,in) -> (in,out); fuse QKV; fold the softmax scale into Q.
    wq_t = params["wq"].T * scale
    wk_t = params["wk"].T
    wv_t = params["wv"].T
    w_qkv = jnp.concatenate([wq_t, wk_t, wv_t], axis=1).astype(compute_dtype)  # (E, 3E)
    b_qkv = jnp.concatenate(
        [params["bq"] * scale, params["bk"], params["bv"]]
    ).reshape(1, 3 * E).astype(jnp.float32)
    wp_t = params["wp"].T.astype(compute_dtype)                                # (E, E)
    bp = params["bp"].reshape(1, E).astype(jnp.float32)

    # Cast x once in the wrapper (the kernel would cast anyway).
    x_c = x.astype(compute_dtype)

    # Physical VMEM ceiling with headroom for compiler-internal scratch:
    # ~48 MiB on v7x (64 MiB/TC), ~96 MiB on v5e/v6e (128 MiB/TC).
    try:
        vmem_cap = int(pltpu.get_tpu_info().vmem_capacity_bytes)
    except Exception:
        vmem_cap = 64 * 1024 * 1024
    vmem_ceiling = (3 * vmem_cap) // 4

    # Query-tile the sequence; bigger tiles on 128-MiB chips amortize per-step overhead.
    candidates = (512, 256, 128) if vmem_cap >= 100 * 1024 * 1024 else (256, 128)
    tq = N
    for cand in candidates:
        if N > cand and N % cand == 0:
            tq = cand
            break
    n_qt = N // tq

    kernel = functools.partial(mha_kernel, num_heads=H, emb_size=E,
                               q_tile=tq, compute_dtype=compute_dtype)

    # Per-step VMEM estimate: double-buffered x block + single-buffered weights
    # + output block + persistent K/V/acc scratch + live f32 intermediates.
    est = (2 * N * E * cd_bytes                        # x block (double-buffered)
           + 4 * E * E * cd_bytes + 4 * E * 4          # weights/biases (Buffered(1))
           + 2 * tq * E * 4                            # output block (double-buffered)
           + 2 * N * E * cd_bytes + tq * E * 4         # K/V + acc scratch
           + N * 2 * E * 4 + tq * E * 4                # kv, q f32 intermediates
           + 2 * tq * N * 4)                           # energy / p
    vmem_limit = int(min(vmem_ceiling, max(16 * 1024 * 1024, 2 * est)))

    cost = pl.CostEstimate(
        flops=int(8 * B * N * E * E          # Q + K + V + output projections
                  + 4 * B * N * N * E),      # QK^T + att@V
        transcendentals=int(B * H * N * N),
        bytes_accessed=int(B * N * E * (cd_bytes + 4)            # x in, out
                           + 4 * E * E * cd_bytes + 4 * E * 4),  # weights, once
    )

    return pl.pallas_call(
        kernel,
        out_shape=jax.ShapeDtypeStruct((B, N, E), out_dtype),
        grid_spec=pltpu.PrefetchScalarGridSpec(
            num_scalar_prefetch=0,
            grid=(B, n_qt),
            in_specs=[
                # x: one full-sequence block per batch element (re-used across qi).
                pl.BlockSpec((None, N, E), lambda b, qi: (b, 0, 0)),
                # Grid-invariant weights/biases: single-buffered.
                pl.BlockSpec((E, 3 * E), lambda b, qi: (0, 0),
                             pipeline_mode=pl.Buffered(1)),
                pl.BlockSpec((1, 3 * E), lambda b, qi: (0, 0),
                             pipeline_mode=pl.Buffered(1)),
                pl.BlockSpec((E, E), lambda b, qi: (0, 0),
                             pipeline_mode=pl.Buffered(1)),
                pl.BlockSpec((1, E), lambda b, qi: (0, 0),
                             pipeline_mode=pl.Buffered(1)),
            ],
            out_specs=pl.BlockSpec((1, tq, E), lambda b, qi: (b, qi, 0)),
            scratch_shapes=[
                pltpu.VMEM((N, E), compute_dtype),   # K (persistent per batch element)
                pltpu.VMEM((N, E), compute_dtype),   # V
                pltpu.VMEM((tq, E), jnp.float32),    # head-output gather
            ],
        ),
        compiler_params=pltpu.CompilerParams(
            dimension_semantics=("parallel", "arbitrary"),
            vmem_limit_bytes=vmem_limit),
        cost_estimate=cost,
    )(x_c, w_qkv, b_qkv, wp_t, bp)


def mha_reference(x, params, *, num_heads: int):
    """Plain-JAX reference mirroring the PyTorch forward (eval mode, mask=None)."""
    B, N, E = x.shape
    H = num_heads
    D = E // H

    def lin(a, w, b):
        return a @ w.T + b

    q = lin(x, params["wq"], params["bq"]).reshape(B, N, H, D).transpose(0, 2, 1, 3)
    k = lin(x, params["wk"], params["bk"]).reshape(B, N, H, D).transpose(0, 2, 1, 3)
    v = lin(x, params["wv"], params["bv"]).reshape(B, N, H, D).transpose(0, 2, 1, 3)

    energy = jnp.einsum("bhqd,bhkd->bhqk", q, k)
    att = jax.nn.softmax(energy / (E ** 0.5), axis=-1)
    out = jnp.einsum("bhal,bhlv->bhav", att, v)
    out = out.transpose(0, 2, 1, 3).reshape(B, N, E)
    return lin(out, params["wp"], params["bp"])


def init_params(key, emb_size):
    """Deterministic init mimicking nn.Linear default (uniform(-1/sqrt(in), 1/sqrt(in)))."""
    bound = 1.0 / math.sqrt(emb_size)
    keys = jax.random.split(key, 8)
    names = ["wq", "bq", "wk", "bk", "wv", "bv", "wp", "bp"]
    shapes = [(emb_size, emb_size), (emb_size,)] * 4
    return {
        n: jax.random.uniform(k, s, jnp.float32, minval=-bound, maxval=bound)
        for n, k, s in zip(names, keys, shapes)
    }


if __name__ == "__main__":
    B, N, EMB, HEADS = 2, 8, 32, 4

    root = jax.random.PRNGKey(0)
    kx, kp = jax.random.split(root)
    x = jax.random.normal(kx, (B, N, EMB), dtype=jnp.float32)
    params = init_params(kp, EMB)

    ref = mha_reference(x, params, num_heads=HEADS)

    # f32 MXU path: tight check (exact softmax division on this path).
    out_f32 = jax.block_until_ready(
        multi_head_attention(x, params, num_heads=HEADS, compute_dtype=jnp.float32))
    assert out_f32.shape == (B, N, EMB)
    assert jnp.allclose(out_f32, ref, atol=5e-3, rtol=5e-3), "f32 kernel mismatch vs reference"

    # bf16 MXU path (default / fast path on v6e/v7x): looser check.
    out_bf16 = jax.block_until_ready(
        multi_head_attention(x, params, num_heads=HEADS, compute_dtype=jnp.bfloat16))
    assert out_bf16.shape == (B, N, EMB)
    assert jnp.allclose(out_bf16, ref, atol=5e-2, rtol=5e-2), "bf16 kernel mismatch vs reference"

    print("KERNEL_OK")
</pallas_src>

<mosaic_0001>
module attributes {stable_mosaic.version = 11 : i64} {
  func.func @mha_kernel(%arg0: i32, %arg1: i32, %arg2: memref<1x8x32xf32, #tpu.memory_space<vmem>>, %arg3: memref<32x96xf32, #tpu.memory_space<vmem>>, %arg4: memref<1x96xf32, #tpu.memory_space<vmem>>, %arg5: memref<32x32xf32, #tpu.memory_space<vmem>>, %arg6: memref<1x32xf32, #tpu.memory_space<vmem>>, %arg7: memref<1x8x32xf32, #tpu.memory_space<vmem>>, %arg8: memref<8x32xf32, #tpu.memory_space<vmem>>, %arg9: memref<8x32xf32, #tpu.memory_space<vmem>>, %arg10: memref<8x32xf32, #tpu.memory_space<vmem>>) attributes {dimension_semantics = [#tpu.dimension_semantics<parallel>, #tpu.dimension_semantics<arbitrary>], iteration_bounds = array<i64: 2, 1>, scalar_prefetch = 0 : i64, scratch_operands = 3 : i64, tpu.core_type = #tpu.core_type<tc>, window_params = [{transform_indices = @transform_0, window_bounds = array<i64: 1, 8, 32>}, {pipeline_mode = #tpu.pipeline_mode<synchronous>, transform_indices = @transform_1, window_bounds = array<i64: 32, 96>}, {pipeline_mode = #tpu.pipeline_mode<synchronous>, transform_indices = @transform_2, window_bounds = array<i64: 1, 96>}, {pipeline_mode = #tpu.pipeline_mode<synchronous>, transform_indices = @transform_3, window_bounds = array<i64: 32, 32>}, {pipeline_mode = #tpu.pipeline_mode<synchronous>, transform_indices = @transform_4, window_bounds = array<i64: 1, 32>}, {transform_indices = @transform_5, window_bounds = array<i64: 1, 8, 32>}]} {
    %c0_i32 = arith.constant 0 : i32
    %0 = arith.cmpi eq, %arg1, %c0_i32 : i32
    %1 = arith.extui %0 : i1 to i32
    %c0_i32_0 = arith.constant 0 : i32
    %2 = arith.cmpi ne, %1, %c0_i32_0 : i32
    scf.if %2 {
      %c0_53 = arith.constant 0 : index
      %c0_54 = arith.constant 0 : index
      %c0_55 = arith.constant 0 : index
      %82 = vector.load %arg2[%c0_53, %c0_54, %c0_55] : memref<1x8x32xf32, #tpu.memory_space<vmem>>, vector<1x8x32xf32>
      %83 = vector.shape_cast %82 : vector<1x8x32xf32> to vector<8x32xf32>
      %c0_56 = arith.constant 0 : index
      %c32 = arith.constant 32 : index
      %84 = vector.load %arg3[%c0_56, %c32] : memref<32x96xf32, #tpu.memory_space<vmem>>, vector<32x64xf32>
      %cst_57 = arith.constant dense<0.000000e+00> : vector<8x64xf32>
      %85 = tpu.matmul %83, %84, %cst_57 {dimension_numbers = #tpu.dot_dimension_numbers<[1], [0], [0], [1], [0, 0, 1, 1], [], []>} : vector<8x32xf32>, vector<32x64xf32>, vector<8x64xf32> -> vector<8x64xf32>
      %c0_58 = arith.constant 0 : index
      %c32_59 = arith.constant 32 : index
      %86 = vector.load %arg4[%c0_58, %c32_59] : memref<1x96xf32, #tpu.memory_space<vmem>>, vector<1x64xf32>
      %87 = vector.broadcast %86 : vector<1x64xf32> to vector<8x64xf32>
      %88 = arith.addf %85, %87 : vector<8x64xf32>
      %89 = vector.extract_strided_slice %88 {offsets = [0, 0], sizes = [8, 32], strides = [1, 1]} : vector<8x64xf32> to vector<8x32xf32>
      %c0_60 = arith.constant 0 : index
      %c0_61 = arith.constant 0 : index
      %90 = vector.load %arg8[%c0_60, %c0_61] : memref<8x32xf32, #tpu.memory_space<vmem>>, vector<8x32xf32>
      tpu.vector_store %arg8[%c0_60, %c0_61], %89 {strides = array<i32>} : memref<8x32xf32, #tpu.memory_space<vmem>>, vector<8x32xf32>,
      %91 = vector.extract_strided_slice %88 {offsets = [0, 32], sizes = [8, 32], strides = [1, 1]} : vector<8x64xf32> to vector<8x32xf32>
      %c0_62 = arith.constant 0 : index
      %c0_63 = arith.constant 0 : index
      %92 = vector.load %arg9[%c0_62, %c0_63] : memref<8x32xf32, #tpu.memory_space<vmem>>, vector<8x32xf32>
      tpu.vector_store %arg9[%c0_62, %c0_63], %91 {strides = array<i32>} : memref<8x32xf32, #tpu.memory_space<vmem>>, vector<8x32xf32>,
    } else {
    }
    %c8_i32 = arith.constant 8 : i32
    %3 = arith.muli %arg1, %c8_i32 : i32
    %4 = tpu.assume_multiple %3, 8 : i32
    %c0 = arith.constant 0 : index
    %5 = arith.index_cast %4 : i32 to index
    %c0_1 = arith.constant 0 : index
    %6 = vector.load %arg2[%c0, %5, %c0_1] : memref<1x8x32xf32, #tpu.memory_space<vmem>>, vector<1x8x32xf32>
    %7 = vector.shape_cast %6 : vector<1x8x32xf32> to vector<8x32xf32>
    %c0_2 = arith.constant 0 : index
    %c0_3 = arith.constant 0 : index
    %8 = vector.load %arg3[%c0_2, %c0_3] : memref<32x96xf32, #tpu.memory_space<vmem>>, vector<32x32xf32>
    %cst = arith.constant dense<0.000000e+00> : vector<8x32xf32>
    %9 = tpu.matmul %7, %8, %cst {dimension_numbers = #tpu.dot_dimension_numbers<[1], [0], [0], [1], [0, 0, 1, 1], [], []>} : vector<8x32xf32>, vector<32x32xf32>, vector<8x32xf32> -> vector<8x32xf32>
    %c0_4 = arith.constant 0 : index
    %c0_5 = arith.constant 0 : index
    %10 = vector.load %arg4[%c0_4, %c0_5] : memref<1x96xf32, #tpu.memory_space<vmem>>, vector<1x32xf32>
    %11 = vector.broadcast %10 : vector<1x32xf32> to vector<8x32xf32>
    %12 = arith.addf %9, %11 : vector<8x32xf32>
    %13 = vector.extract_strided_slice %12 {offsets = [0, 0], sizes = [8, 8], strides = [1, 1]} : vector<8x32xf32> to vector<8x8xf32>
    %c0_6 = arith.constant 0 : index
    %c0_7 = arith.constant 0 : index
    %14 = vector.load %arg8[%c0_6, %c0_7] : memref<8x32xf32, #tpu.memory_space<vmem>>, vector<8x8xf32>
    %c0_8 = arith.constant 0 : index
    %c0_9 = arith.constant 0 : index
    %15 = vector.load %arg9[%c0_8, %c0_9] : memref<8x32xf32, #tpu.memory_space<vmem>>, vector<8x8xf32>
    %cst_10 = arith.constant dense<0.000000e+00> : vector<8x8xf32>
    %16 = tpu.matmul %13, %14, %cst_10 {dimension_numbers = #tpu.dot_dimension_numbers<[1], [1], [0], [0], [0, 0, 1, 0], [], []>} : vector<8x8xf32>, vector<8x8xf32>, vector<8x8xf32> -> vector<8x8xf32>
    %cst_11 = arith.constant dense<0xFF800000> : vector<8xf32>
    %17 = vector.multi_reduction <maximumf>, %16, %cst_11 [1] : vector<8x8xf32> to vector<8xf32>
    %18 = vector.shape_cast %17 : vector<8xf32> to vector<8x1xf32>
    %19 = vector.broadcast %18 : vector<8x1xf32> to vector<8x8xf32>
    %20 = arith.subf %16, %19 : vector<8x8xf32>
    %21 = math.exp %20 : vector<8x8xf32>
    %cst_12 = arith.constant dense<0.000000e+00> : vector<8xf32>
    %22 = vector.multi_reduction <add>, %21, %cst_12 [1] : vector<8x8xf32> to vector<8xf32>
    %23 = vector.shape_cast %22 : vector<8xf32> to vector<8x1xf32>
    %24 = vector.broadcast %23 : vector<8x1xf32> to vector<8x8xf32>
    %25 = arith.divf %21, %24 : vector<8x8xf32>
    %cst_13 = arith.constant dense<0.000000e+00> : vector<8x8xf32>
    %26 = tpu.matmul %25, %15, %cst_13 {dimension_numbers = #tpu.dot_dimension_numbers<[1], [0], [0], [1], [0, 0, 1, 1], [], []>} : vector<8x8xf32>, vector<8x8xf32>, vector<8x8xf32> -> vector<8x8xf32>
    %c0_14 = arith.constant 0 : index
    %c0_15 = arith.constant 0 : index
    %27 = vector.load %arg10[%c0_14, %c0_15] : memref<8x32xf32, #tpu.memory_space<vmem>>, vector<8x8xf32>
    tpu.vector_store %arg10[%c0_14, %c0_15], %26 {strides = array<i32>} : memref<8x32xf32, #tpu.memory_space<vmem>>, vector<8x8xf32>,
    %28 = vector.extract_strided_slice %12 {offsets = [0, 8], sizes = [8, 8], strides = [1, 1]} : vector<8x32xf32> to vector<8x8xf32>
    %c0_16 = arith.constant 0 : index
    %c8 = arith.constant 8 : index
    %29 = vector.load %arg8[%c0_16, %c8] : memref<8x32xf32, #tpu.memory_space<vmem>>, vector<8x8xf32>
    %c0_17 = arith.constant 0 : index
    %c8_18 = arith.constant 8 : index
    %30 = vector.load %arg9[%c0_17, %c8_18] : memref<8x32xf32, #tpu.memory_space<vmem>>, vector<8x8xf32>
    %cst_19 = arith.constant dense<0.000000e+00> : vector<8x8xf32>
    %31 = tpu.matmul %28, %29, %cst_19 {dimension_numbers = #tpu.dot_dimension_numbers<[1], [1], [0], [0], [0, 0, 1, 0], [], []>} : vector<8x8xf32>, vector<8x8xf32>, vector<8x8xf32> -> vector<8x8xf32>
    %cst_20 = arith.constant dense<0xFF800000> : vector<8xf32>
    %32 = vector.multi_reduction <maximumf>, %31, %cst_20 [1] : vector<8x8xf32> to vector<8xf32>
    %33 = vector.shape_cast %32 : vector<8xf32> to vector<8x1xf32>
    %34 = vector.broadcast %33 : vector<8x1xf32> to vector<8x8xf32>
    %35 = arith.subf %31, %34 : vector<8x8xf32>
    %36 = math.exp %35 : vector<8x8xf32>
    %cst_21 = arith.constant dense<0.000000e+00> : vector<8xf32>
    %37 = vector.multi_reduction <add>, %36, %cst_21 [1] : vector<8x8xf32> to vector<8xf32>
    %38 = vector.shape_cast %37 : vector<8xf32> to vector<8x1xf32>
    %39 = vector.broadcast %38 : vector<8x1xf32> to vector<8x8xf32>
    %40 = arith.divf %36, %39 : vector<8x8xf32>
    %cst_22 = arith.constant dense<0.000000e+00> : vector<8x8xf32>
    %41 = tpu.matmul %40, %30, %cst_22 {dimension_numbers = #tpu.dot_dimension_numbers<[1], [0], [0], [1], [0, 0, 1, 1], [], []>} : vector<8x8xf32>, vector<8x8xf32>, vector<8x8xf32> -> vector<8x8xf32>
    %c0_23 = arith.constant 0 : index
    %c8_24 = arith.constant 8 : index
    %42 = vector.load %arg10[%c0_23, %c8_24] : memref<8x32xf32, #tpu.memory_space<vmem>>, vector<8x8xf32>
    tpu.vector_store %arg10[%c0_23, %c8_24], %41 {strides = array<i32>} : memref<8x32xf32, #tpu.memory_space<vmem>>, vector<8x8xf32>,
    %43 = vector.extract_strided_slice %12 {offsets = [0, 16], sizes = [8, 8], strides = [1, 1]} : vector<8x32xf32> to vector<8x8xf32>
    %c0_25 = arith.constant 0 : index
    %c16 = arith.constant 16 : index
    %44 = vector.load %arg8[%c0_25, %c16] : memref<8x32xf32, #tpu.memory_space<vmem>>, vector<8x8xf32>
    %c0_26 = arith.constant 0 : index
    %c16_27 = arith.constant 16 : index
    %45 = vector.load %arg9[%c0_26, %c16_27] : memref<8x32xf32, #tpu.memory_space<vmem>>, vector<8x8xf32>
    %cst_28 = arith.constant dense<0.000000e+00> : vector<8x8xf32>
    %46 = tpu.matmul %43, %44, %cst_28 {dimension_numbers = #tpu.dot_dimension_numbers<[1], [1], [0], [0], [0, 0, 1, 0], [], []>} : vector<8x8xf32>, vector<8x8xf32>, vector<8x8xf32> -> vector<8x8xf32>
    %cst_29 = arith.constant dense<0xFF800000> : vector<8xf32>
    %47 = vector.multi_reduction <maximumf>, %46, %cst_29 [1] : vector<8x8xf32> to vector<8xf32>
    %48 = vector.shape_cast %47 : vector<8xf32> to vector<8x1xf32>
    %49 = vector.broadcast %48 : vector<8x1xf32> to vector<8x8xf32>
    %50 = arith.subf %46, %49 : vector<8x8xf32>
    %51 = math.exp %50 : vector<8x8xf32>
    %cst_30 = arith.constant dense<0.000000e+00> : vector<8xf32>
    %52 = vector.multi_reduction <add>, %51, %cst_30 [1] : vector<8x8xf32> to vector<8xf32>
    %53 = vector.shape_cast %52 : vector<8xf32> to vector<8x1xf32>
    %54 = vector.broadcast %53 : vector<8x1xf32> to vector<8x8xf32>
    %55 = arith.divf %51, %54 : vector<8x8xf32>
    %cst_31 = arith.constant dense<0.000000e+00> : vector<8x8xf32>
    %56 = tpu.matmul %55, %45, %cst_31 {dimension_numbers = #tpu.dot_dimension_numbers<[1], [0], [0], [1], [0, 0, 1, 1], [], []>} : vector<8x8xf32>, vector<8x8xf32>, vector<8x8xf32> -> vector<8x8xf32>
    %c0_32 = arith.constant 0 : index
    %c16_33 = arith.constant 16 : index
    %57 = vector.load %arg10[%c0_32, %c16_33] : memref<8x32xf32, #tpu.memory_space<vmem>>, vector<8x8xf32>
    tpu.vector_store %arg10[%c0_32, %c16_33], %56 {strides = array<i32>} : memref<8x32xf32, #tpu.memory_space<vmem>>, vector<8x8xf32>,
    %58 = vector.extract_strided_slice %12 {offsets = [0, 24], sizes = [8, 8], strides = [1, 1]} : vector<8x32xf32> to vector<8x8xf32>
    %c0_34 = arith.constant 0 : index
    %c24 = arith.constant 24 : index
    %59 = vector.load %arg8[%c0_34, %c24] : memref<8x32xf32, #tpu.memory_space<vmem>>, vector<8x8xf32>
    %c0_35 = arith.constant 0 : index
    %c24_36 = arith.constant 24 : index
    %60 = vector.load %arg9[%c0_35, %c24_36] : memref<8x32xf32, #tpu.memory_space<vmem>>, vector<8x8xf32>
    %cst_37 = arith.constant dense<0.000000e+00> : vector<8x8xf32>
    %61 = tpu.matmul %58, %59, %cst_37 {dimension_numbers = #tpu.dot_dimension_numbers<[1], [1], [0], [0], [0, 0, 1, 0], [], []>} : vector<8x8xf32>, vector<8x8xf32>, vector<8x8xf32> -> vector<8x8xf32>
    %cst_38 = arith.constant dense<0xFF800000> : vector<8xf32>
    %62 = vector.multi_reduction <maximumf>, %61, %cst_38 [1] : vector<8x8xf32> to vector<8xf32>
    %63 = vector.shape_cast %62 : vector<8xf32> to vector<8x1xf32>
    %64 = vector.broadcast %63 : vector<8x1xf32> to vector<8x8xf32>
    %65 = arith.subf %61, %64 : vector<8x8xf32>
    %66 = math.exp %65 : vector<8x8xf32>
    %cst_39 = arith.constant dense<0.000000e+00> : vector<8xf32>
    %67 = vector.multi_reduction <add>, %66, %cst_39 [1] : vector<8x8xf32> to vector<8xf32>
    %68 = vector.shape_cast %67 : vector<8xf32> to vector<8x1xf32>
    %69 = vector.broadcast %68 : vector<8x1xf32> to vector<8x8xf32>
    %70 = arith.divf %66, %69 : vector<8x8xf32>
    %cst_40 = arith.constant dense<0.000000e+00> : vector<8x8xf32>
    %71 = tpu.matmul %70, %60, %cst_40 {dimension_numbers = #tpu.dot_dimension_numbers<[1], [0], [0], [1], [0, 0, 1, 1], [], []>} : vector<8x8xf32>, vector<8x8xf32>, vector<8x8xf32> -> vector<8x8xf32>
    %c0_41 = arith.constant 0 : index
    %c24_42 = arith.constant 24 : index
    %72 = vector.load %arg10[%c0_41, %c24_42] : memref<8x32xf32, #tpu.memory_space<vmem>>, vector<8x8xf32>
    tpu.vector_store %arg10[%c0_41, %c24_42], %71 {strides = array<i32>} : memref<8x32xf32, #tpu.memory_space<vmem>>, vector<8x8xf32>,
    %c0_43 = arith.constant 0 : index
    %c0_44 = arith.constant 0 : index
    %73 = vector.load %arg10[%c0_43, %c0_44] : memref<8x32xf32, #tpu.memory_space<vmem>>, vector<8x32xf32>
    %c0_45 = arith.constant 0 : index
    %c0_46 = arith.constant 0 : index
    %74 = vector.load %arg5[%c0_45, %c0_46] : memref<32x32xf32, #tpu.memory_space<vmem>>, vector<32x32xf32>
    %cst_47 = arith.constant dense<0.000000e+00> : vector<8x32xf32>
    %75 = tpu.matmul %73, %74, %cst_47 {dimension_numbers = #tpu.dot_dimension_numbers<[1], [0], [0], [1], [0, 0, 1, 1], [], []>} : vector<8x32xf32>, vector<32x32xf32>, vector<8x32xf32> -> vector<8x32xf32>
    %c0_48 = arith.constant 0 : index
    %c0_49 = arith.constant 0 : index
    %76 = vector.load %arg6[%c0_48, %c0_49] : memref<1x32xf32, #tpu.memory_space<vmem>>, vector<1x32xf32>
    %77 = vector.broadcast %76 : vector<1x32xf32> to vector<8x32xf32>
    %78 = arith.addf %75, %77 : vector<8x32xf32>
    %c0_50 = arith.constant 0 : index
    %c0_51 = arith.constant 0 : index
    %c0_52 = arith.constant 0 : index
    %79 = vector.load %arg7[%c0_50, %c0_51, %c0_52] : memref<1x8x32xf32, #tpu.memory_space<vmem>>, vector<1x8x32xf32>
    %80 = vector.shape_cast %79 : vector<1x8x32xf32> to vector<8x32xf32>
    %81 = vector.shape_cast %78 : vector<8x32xf32> to vector<1x8x32xf32>
    tpu.vector_store %arg7[%c0_50, %c0_51, %c0_52], %81 {strides = array<i32>} : memref<1x8x32xf32, #tpu.memory_space<vmem>>, vector<1x8x32xf32>,
    return
  }
  func.func @transform_0(%arg0: i32, %arg1: i32) -> (i32, i32, i32) {
    %c0_i32 = arith.constant 0 : i32
    %c0_i32_0 = arith.constant 0 : i32
    %c0_i32_1 = arith.constant 0 : i32
    return %arg0, %c0_i32, %c0_i32_0 : i32, i32, i32
  }
  func.func @transform_1(%arg0: i32, %arg1: i32) -> (i32, i32) {
    %c0_i32 = arith.constant 0 : i32
    %c0_i32_0 = arith.constant 0 : i32
    %c0_i32_1 = arith.constant 0 : i32
    return %c0_i32, %c0_i32_0 : i32, i32
  }
  func.func @transform_2(%arg0: i32, %arg1: i32) -> (i32, i32) {
    %c0_i32 = arith.constant 0 : i32
    %c0_i32_0 = arith.constant 0 : i32
    %c0_i32_1 = arith.constant 0 : i32
    return %c0_i32, %c0_i32_0 : i32, i32
  }
  func.func @transform_3(%arg0: i32, %arg1: i32) -> (i32, i32) {
    %c0_i32 = arith.constant 0 : i32
    %c0_i32_0 = arith.constant 0 : i32
    %c0_i32_1 = arith.constant 0 : i32
    return %c0_i32, %c0_i32_0 : i32, i32
  }
  func.func @transform_4(%arg0: i32, %arg1: i32) -> (i32, i32) {
    %c0_i32 = arith.constant 0 : i32
    %c0_i32_0 = arith.constant 0 : i32
    %c0_i32_1 = arith.constant 0 : i32
    return %c0_i32, %c0_i32_0 : i32, i32
  }
  func.func @transform_5(%arg0: i32, %arg1: i32) -> (i32, i32, i32) {
    %c0_i32 = arith.constant 0 : i32
    %c0_i32_0 = arith.constant 0 : i32
    return %arg0, %arg1, %c0_i32 : i32, i32, i32
  }
}

</mosaic_0001>

<llo_original>
// kernel: tpu_custom_call.1
$region0: #{tpu_custom_call.1}
  #allocation0 [shape = 'u32[]', space=smem, size = 0x4, offset = 0x4, fixed_abs, tag = 'smem constant byte address 0x4 - core index']
  #allocation1 [shape = 'u32[144,128]{1,0:T(1,128)}', space=vmem, size = 0x12000, scoped, tag = 'internal scratch']
  #allocation2 [shape = 'f32[8,32]{1,0:T(8,128)}', space=vmem, size = 0x1000, scoped, tag = 'scratch operand']
  #allocation3 [shape = 'f32[8,32]{1,0:T(8,128)}', space=vmem, size = 0x1000, scoped, tag = 'scratch operand']
  #allocation4 [shape = 'f32[8,32]{1,0:T(8,128)}', space=vmem, size = 0x1000, scoped, tag = 'scratch operand']
  %s0 = inlined_call_operand.hbm [shape: f32[2,8,32], index: 0, kind: input, shape index: {}]
  %s1 = inlined_call_operand.hbm [shape: f32[32,96], index: 1, kind: input, shape index: {}]
  %s2 = inlined_call_operand.vmem [shape: f32[1,96], index: 2, kind: input, shape index: {}]
  %s3 = inlined_call_operand.hbm [shape: f32[32,32], index: 3, kind: input, shape index: {}]
  %s4 = inlined_call_operand.vmem [shape: f32[1,32], index: 4, kind: input, shape index: {}]
  %s5 = inlined_call_operand.hbm [shape: f32[2,8,32], index: 5, kind: output, shape index: {}]
  %s6 = sld [smem:[#allocation0]]
  $region69: #{tpu_custom_call.1} parent=0
    _
  %s8 = ssub.s32 1, %s6
  %s9 = scalar_select 0, %s8, %s6
  $region1: #{tpu_custom_call.1} parent=0
    #allocation5 [shape = 'u8[8192]{0}', space=vmem, size = 0x2000, scoped, tag = 'input window, operand 0']
    #allocation6 [shape = 's32[2]{0}', space=sflag, size = 0x8, scoped, tag = 'scoped memory for tpu_custom_call.1']
    #allocation7 [shape = 's32[2]{0}', space=sflag, size = 0x8, scoped, tag = 'scoped memory for tpu_custom_call.1']
    #allocation8 [shape = 'u8[16384]{0}', space=vmem, size = 0x4000, scoped, tag = 'input window, operand 1, single buffered']
    #allocation9 [shape = 's32[1]{0}', space=sflag, size = 0x4, scoped, tag = 'scoped memory for tpu_custom_call.1']
    #allocation10 [shape = 'u8[16384]{0}', space=vmem, size = 0x4000, scoped, tag = 'input window, operand 3, single buffered']
    #allocation11 [shape = 'u8[8192]{0}', space=vmem, size = 0x2000, scoped, tag = 'output window, operand 0']
    %10 = vsyncpa [#allocation6], 0
    %s11 = scalar_lea.sflag [#allocation6], 1
    %12 = vsyncpa %s11, 0
    %13 = vsyncpa [#allocation9], 0
    %14 = vsyncpa [#allocation7], 0
    %s15 = scalar_lea.sflag [#allocation7], 1
    %16 = vsyncpa %s15, 0
    loop: start=0, step=1, limit=4
    $region2: #{tpu_custom_call.1} parent=1 // loop_pre_header
      _
    $region3: #{tpu_custom_call.1} parent=1 // loop_header
      %s18 = sphi 0, %s22
      %p19 = scmp.ge.s32.totalorder %s18, 4
      %s25 = sphi 0, %s37
      %s26 = sphi 0, %s33
      %s27 = sphi 0, %s25
      %s28 = sphi 0, %s26
      %s29 = sphi 0, %s27
      %s30 = sphi 0, %s28
      %s40 = sphi 0, %s42
      %s43 = sphi 0, %s40
      %s44 = sphi 0, %s43
      %s60 = sphi 0, %s44
      %s64 = sphi 0, %s64
      %s66 = sphi 0, %s64
      %s67 = sphi 0, %s66
      %s81 = sphi 0, %s67
      %s85 = sphi 0, %s85
      %s87 = sphi 0, %s85
      %s88 = sphi 0, %s87
      %s102 = sphi 0, %s88
      %s106 = sphi 0, %s106
      %s108 = sphi 0, %s106
      %s109 = sphi 0, %s108
      %s123 = sphi 0, %s109
      %s127 = sphi 0, %s127
      %s129 = sphi 0, %s127
      %s130 = sphi 0, %s129
      %s144 = sphi 0, %s130
      %s152 = sphi 0, %s154
      %s155 = sphi 0, %s152
      %s156 = sphi 0, %s155
      %s172 = sphi 0, %s156
    $region4: #{tpu_custom_call.1} parent=1 // loop_header_branch
      %21 = sbr.rel (%p19) target = $region8
    $region5: #{tpu_custom_call.1} parent=1 // loop_body
      %s23 = ssub.s32 %s18, 1
      %s24 = ssub.s32 %s18, 2
      %s31 = sadd.s32 1, %s26
      %p32 = scmp.ge.s32.totalorder %s31, 1
      %s33 = scalar_select %p32, 0, %s31
      %s34 = sadd.s32 1, %s25
      %s35 = scalar_select %p32, %s34, %s25
      %p36 = scmp.ge.s32.totalorder %s35, 2
      %s37 = scalar_select %p36, 0, %s35
      %s38 = ssub.s32 %s25, %s37
      %p39 = scmp.eq.s32.totalorder %s38, 0
      %s41 = sadd.s32 %s40, 1
      %s42 = scalar_select %p39, %s40, %s41
      %p45 = pneg %p39
      %p46 = scmp.eq.s32.totalorder %s18, 1
      %p47 = por %p45, %p46
      %p48 = scmp.ne.s32.totalorder %s40, %s43
      %p49 = scmp.eq.s32.totalorder %s18, 0
      %p50 = por %p48, %p49
      %p51 = scmp.ne.s32.totalorder %s40, %s43
      %p52 = scmp.eq.s32.totalorder %s23, 1
      %p53 = por %p51, %p52
      %p54 = scmp.ne.s32.totalorder %s43, %s44
      %p55 = scmp.eq.s32.totalorder %s23, 0
      %p56 = por %p54, %p55
      %p57 = scmp.ne.s32.totalorder %s43, %s44
      %p58 = scmp.eq.s32.totalorder %s24, 1
      %p59 = por %p57, %p58
      %p61 = scmp.ne.s32.totalorder %s44, %s60
      %p62 = scmp.eq.s32.totalorder %s24, 0
      %p63 = por %p61, %p62
      %s65 = sadd.s32 %s64, 1
      %p68 = scmp.eq.s32.totalorder %s18, 1
      %p69 = scmp.ne.s32.totalorder %s64, %s66
      %p70 = scmp.eq.s32.totalorder %s18, 0
      %p71 = por %p69, %p70
      %p72 = scmp.ne.s32.totalorder %s64, %s66
      %p73 = scmp.eq.s32.totalorder %s23, 1
      %p74 = por %p72, %p73
      %p75 = scmp.ne.s32.totalorder %s66, %s67
      %p76 = scmp.eq.s32.totalorder %s23, 0
      %p77 = por %p75, %p76
      %p78 = scmp.ne.s32.totalorder %s66, %s67
      %p79 = scmp.eq.s32.totalorder %s24, 1
      %p80 = por %p78, %p79
      %p82 = scmp.ne.s32.totalorder %s67, %s81
      %p83 = scmp.eq.s32.totalorder %s24, 0
      %p84 = por %p82, %p83
      %s86 = sadd.s32 %s85, 1
      %p89 = scmp.eq.s32.totalorder %s18, 1
      %p90 = scmp.ne.s32.totalorder %s85, %s87
      %p91 = scmp.eq.s32.totalorder %s18, 0
      %p92 = por %p90, %p91
      %p93 = scmp.ne.s32.totalorder %s85, %s87
      %p94 = scmp.eq.s32.totalorder %s23, 1
      %p95 = por %p93, %p94
      %p96 = scmp.ne.s32.totalorder %s87, %s88
      %p97 = scmp.eq.s32.totalorder %s23, 0
      %p98 = por %p96, %p97
      %p99 = scmp.ne.s32.totalorder %s87, %s88
      %p100 = scmp.eq.s32.totalorder %s24, 1
      %p101 = por %p99, %p100
      %p103 = scmp.ne.s32.totalorder %s88, %s102
      %p104 = scmp.eq.s32.totalorder %s24, 0
      %p105 = por %p103, %p104
      %s107 = sadd.s32 %s106, 1
      %p110 = scmp.eq.s32.totalorder %s18, 1
      %p111 = scmp.ne.s32.totalorder %s106, %s108
      %p112 = scmp.eq.s32.totalorder %s18, 0
      %p113 = por %p111, %p112
      %p114 = scmp.ne.s32.totalorder %s106, %s108
      %p115 = scmp.eq.s32.totalorder %s23, 1
      %p116 = por %p114, %p115
      %p117 = scmp.ne.s32.totalorder %s108, %s109
      %p118 = scmp.eq.s32.totalorder %s23, 0
      %p119 = por %p117, %p118
      %p120 = scmp.ne.s32.totalorder %s108, %s109
      %p121 = scmp.eq.s32.totalorder %s24, 1
      %p122 = por %p120, %p121
      %p124 = scmp.ne.s32.totalorder %s109, %s123
      %p125 = scmp.eq.s32.totalorder %s24, 0
      %p126 = por %p124, %p125
      %s128 = sadd.s32 %s127, 1
      %p131 = scmp.eq.s32.totalorder %s18, 1
      %p132 = scmp.ne.s32.totalorder %s127, %s129
      %p133 = scmp.eq.s32.totalorder %s18, 0
      %p134 = por %p132, %p133
      %p135 = scmp.ne.s32.totalorder %s127, %s129
      %p136 = scmp.eq.s32.totalorder %s23, 1
      %p137 = por %p135, %p136
      %p138 = scmp.ne.s32.totalorder %s129, %s130
      %p139 = scmp.eq.s32.totalorder %s23, 0
      %p140 = por %p138, %p139
      %p141 = scmp.ne.s32.totalorder %s129, %s130
      %p142 = scmp.eq.s32.totalorder %s24, 1
      %p143 = por %p141, %p142
      %p145 = scmp.ne.s32.totalorder %s130, %s144
      %p146 = scmp.eq.s32.totalorder %s24, 0
      %p147 = por %p145, %p146
      %s148 = ssub.s32 %s25, %s37
      %s149 = ssub.s32 %s26, %s33
      %s150 = sor.u32 %s148, %s149
      %p151 = scmp.eq.s32.totalorder %s150, 0
      %s153 = sadd.s32 %s152, 1
      %s154 = scalar_select %p151, %s152, %s153
      %p157 = pneg %p151
      %p158 = scmp.eq.s32.totalorder %s18, 1
      %p159 = por %p157, %p158
      %p160 = scmp.ne.s32.totalorder %s152, %s155
      %p161 = scmp.eq.s32.totalorder %s18, 0
      %p162 = por %p160, %p161
      %p163 = scmp.ne.s32.totalorder %s152, %s155
      %p164 = scmp.eq.s32.totalorder %s23, 1
      %p165 = por %p163, %p164
      %p166 = scmp.ne.s32.totalorder %s155, %s156
      %p167 = scmp.eq.s32.totalorder %s23, 0
      %p168 = por %p166, %p167
      %p169 = scmp.ne.s32.totalorder %s155, %s156
      %p170 = scmp.eq.s32.totalorder %s24, 1
      %p171 = por %p169, %p170
      %p173 = scmp.ne.s32.totalorder %s156, %s172
      %p174 = scmp.eq.s32.totalorder %s24, 0
      %p175 = por %p173, %p174
      %p176 = scmp.le.s32.totalorder 1, %s18
      %p177 = scmp.lt.s32.totalorder %s18, 3
      %p178 = pnand %p176, %p177
      %p179 = pneg %p178
      // Predicated region
      $region9: #{tpu_custom_call.1} parent=5 // pred_check
        _
      $region10: #{tpu_custom_call.1} parent=5 // pred_check_branch
        %181 = sbr.rel (%p178) target = $region12
      $region11: #{tpu_custom_call.1} parent=5 // pred_region
        %s182 = ssub.s32 %s18, 1
        // Predicated region
        $region13: #{tpu_custom_call.1} parent=11 // pred_check
          %p183 = pneg %p77
        $region14: #{tpu_custom_call.1} parent=11 // pred_check_branch
          %185 = sbr.rel (%p183) target = $region16
        $region15: #{tpu_custom_call.1} parent=11 // pred_region
          %s187 = ssub.s32 512, 512
          %188 = vsyncadd [#allocation9], %s187
          %s189 = sshll.u32 [#allocation8], 4
          %s190 = int_to_ptr.vmem [resolvable:$true] %s189
          %195 = dma.hbm_to_vmem [thread:$0]  %s1, 512, %s190, [#allocation9], 128, 128, 8
        $region16: #{tpu_custom_call.1} parent=11 // pred_fallthru
          _
        // Predicated region
        $region17: #{tpu_custom_call.1} parent=11 // pred_check
          %p196 = pneg %p98
        $region18: #{tpu_custom_call.1} parent=11 // pred_check_branch
          %198 = sbr.rel (%p196) target = $region20
        $region19: #{tpu_custom_call.1} parent=11 // pred_region
          _
        $region20: #{tpu_custom_call.1} parent=11 // pred_fallthru
          _
        // Predicated region
        $region21: #{tpu_custom_call.1} parent=11 // pred_check
          %p199 = pneg %p119
        $region22: #{tpu_custom_call.1} parent=11 // pred_check_branch
          %201 = sbr.rel (%p199) target = $region24
        $region23: #{tpu_custom_call.1} parent=11 // pred_region
          %s203 = ssub.s32 512, 512
          %204 = vsyncadd [#allocation9], %s203
          %s205 = sshll.u32 [#allocation10], 4
          %s206 = int_to_ptr.vmem [resolvable:$true] %s205
          %211 = dma.hbm_to_vmem [thread:$0]  %s3, 512, %s206, [#allocation9], 128, 128, 8
        $region24: #{tpu_custom_call.1} parent=11 // pred_fallthru
          _
        // Predicated region
        $region25: #{tpu_custom_call.1} parent=11 // pred_check
          %p212 = pneg %p140
        $region26: #{tpu_custom_call.1} parent=11 // pred_check_branch
          %214 = sbr.rel (%p212) target = $region28
        $region27: #{tpu_custom_call.1} parent=11 // pred_region
          _
        $region28: #{tpu_custom_call.1} parent=11 // pred_fallthru
          _
      $region12: #{tpu_custom_call.1} parent=5 // pred_fallthru
        _
      %p215 = scmp.lt.s32.totalorder %s18, 2
      // Predicated region
      $region29: #{tpu_custom_call.1} parent=5 // pred_check
        %p216 = pneg %p215
      $region30: #{tpu_custom_call.1} parent=5 // pred_check_branch
        %218 = sbr.rel (%p216) target = $region32
      $region31: #{tpu_custom_call.1} parent=5 // pred_region
        // Predicated region
        $region33: #{tpu_custom_call.1} parent=31 // pred_check
          %p219 = pneg %p50
        $region34: #{tpu_custom_call.1} parent=31 // pred_check_branch
          %221 = sbr.rel (%p219) target = $region36
        $region35: #{tpu_custom_call.1} parent=31 // pred_region
          %s222 = sand.u32 %s40, 1
          %s223 = scalar_lea.sflag [#allocation6], %s222
          %s224 = sand.u32 %s40, 1
          %s225 = smul.addr %s224, 8
          %s226 = scalar_lea.vmem [#allocation5], %s225
          %s228 = ssub.s32 128, 128
          %229 = vsyncadd %s223, %s228
          %s230 = smul.addr %s25, 128
          %s231 = scalar_lea.hbm %s0, %s230
          %s233 = sshll.u32 %s226, 4
          %s234 = int_to_ptr.vmem [resolvable:$true] %s233
          %236 = dma.hbm_to_vmem [thread:$0]  %s231, 128, %s234, %s223
        $region36: #{tpu_custom_call.1} parent=31 // pred_fallthru
          _
      $region32: #{tpu_custom_call.1} parent=5 // pred_fallthru
        _
      %p237 = scmp.le.s32.totalorder 1, %s18
      %p238 = scmp.lt.s32.totalorder %s18, 3
      %p239 = pnand %p237, %p238
      %p240 = pneg %p239
      // Predicated region
      $region37: #{tpu_custom_call.1} parent=5 // pred_check
        _
      $region38: #{tpu_custom_call.1} parent=5 // pred_check_branch
        %242 = sbr.rel (%p239) target = $region40
      $region39: #{tpu_custom_call.1} parent=5 // pred_region
        %s243 = ssub.s32 %s18, 1
        %s244 = sand.u32 %s43, 1
        %s245 = scalar_lea.sflag [#allocation6], %s244
        %s246 = sand.u32 %s43, 1
        %s247 = smul.addr %s246, 8
        %s248 = scalar_lea.vmem [#allocation5], %s247
        // Predicated region
        $region41: #{tpu_custom_call.1} parent=39 // pred_check
          %p249 = pneg %p56
        $region42: #{tpu_custom_call.1} parent=39 // pred_check_branch
          %251 = sbr.rel (%p249) target = $region44
        $region43: #{tpu_custom_call.1} parent=39 // pred_region
          %252 = dma.done %s245, 128
        $region44: #{tpu_custom_call.1} parent=39 // pred_fallthru
          _
        // Predicated region
        $region45: #{tpu_custom_call.1} parent=39 // pred_check
          %p253 = pneg %p77
        $region46: #{tpu_custom_call.1} parent=39 // pred_check_branch
          %255 = sbr.rel (%p253) target = $region48
        $region47: #{tpu_custom_call.1} parent=39 // pred_region
          %256 = dma.done [#allocation9], 512
        $region48: #{tpu_custom_call.1} parent=39 // pred_fallthru
          _
        // Predicated region
        $region49: #{tpu_custom_call.1} parent=39 // pred_check
          %p257 = pneg %p119
        $region50: #{tpu_custom_call.1} parent=39 // pred_check_branch
          %259 = sbr.rel (%p257) target = $region52
        $region51: #{tpu_custom_call.1} parent=39 // pred_region
          %260 = dma.done [#allocation9], 512
        $region52: #{tpu_custom_call.1} parent=39 // pred_fallthru
          _
        %s261 = sand.u32 %s43, 1
        %s262 = scalar_lea.sflag [#allocation6], %s261
        %s263 = sand.u32 %s43, 1
        %s264 = smul.addr %s263, 8
        %s265 = scalar_lea.vmem [#allocation5], %s264
        %p266 = pneg %p56
        %p267 = pneg %p53
        %p268 = pneg %p77
        %p269 = pneg %p74
        %p270 = pneg %p98
        %p271 = pneg %p95
        %p272 = pneg %p119
        %p273 = pneg %p116
        %p274 = pneg %p140
        %p275 = pneg %p137
        %p276 = pneg %p168
        %p277 = pneg %p165
        %s278 = sand.u32 %s155, 1
        %s279 = scalar_lea.sflag [#allocation7], %s278
        %s280 = sand.u32 %s155, 1
        %s281 = smul.addr %s280, 8
        %s282 = scalar_lea.vmem [#allocation11], %s281
        %p283 = scmp.eq.s32.totalorder %s28, 0
        // Predicated region
        $region53: #{tpu_custom_call.1} parent=39 // pred_check
          %p284 = pneg %p283
        $region54: #{tpu_custom_call.1} parent=39 // pred_check_branch
          %286 = sbr.rel (%p284) target = $region56
        $region55: #{tpu_custom_call.1} parent=39 // pred_region
          %v287 = vld [vmem:[%s248] sm:$0xff]
          %v288 = vld [vmem:[#allocation8] sm:$0xff]
          %v289 = vld [vmem:[#allocation8 + $0x8] sm:$0xff]
          %v290 = vld [vmem:[#allocation8 + $0x10] sm:$0xff]
          %v291 = vld [vmem:[#allocation8 + $0x18] sm:$0xff]
          %v292 = vld [vmem:[%s2] sm:$0x1]
          %v294 = vlaneseq
          %v295 = vshrl.u32 %v294, 7
          %v296 = vsub.s32 0, %v295
          %v297 = vrot.slane %v292, %v296
          %302 = vrot.lane.b32.xlu0 %v288, 96
          %v303 = vpop.permute.xlu0 %302
          %304 = vrot.lane.b32.xlu0 %v289, 96
          %v305 = vpop.permute.xlu0 %304
          %306 = vrot.lane.b32.xlu0 %v290, 96
          %v307 = vpop.permute.xlu0 %306
          %308 = vrot.lane.b32.xlu0 %v291, 96
          %v309 = vpop.permute.xlu0 %308
          %314 = vrot.lane.b32.xlu0 %v297, 96
          %v315 = vpop.permute.xlu0 %314
          %vm317 = vcmask 261120
          %v319 = vsel %vm317, %v287, 0
          %321 = vmatprep.subr.mxu0 0.0
          %322 = vmatpush1.msra.mxu0 0.0
          %323 = vmatprep.subr.mxu0 0.0
          %324 = vmatpush1.msra.mxu0 0.0
          %325 = vmatprep.subr.mxu0 0.0
          %326 = vmatpush1.msra.mxu0 0.0
          %327 = vmatprep.subr.mxu0 0.0
          %328 = vmatpush1.msra.mxu0 0.0
          %329 = vmatprep.subr.mxu0 0.0
          %330 = vmatpush1.msra.mxu0 0.0
          %331 = vmatprep.subr.mxu0 0.0
          %332 = vmatpush1.msra.mxu0 0.0
          %333 = vmatprep.subr.mxu0 0.0
          %334 = vmatpush1.msra.mxu0 0.0
          %335 = vmatprep.subr.mxu0 0.0
          %336 = vmatpush1.msra.mxu0 0.0
          %337 = vmatprep.subr.mxu0 0.0
          %338 = vmatpush1.msra.mxu0 0.0
          %339 = vmatprep.subr.mxu0 0.0
          %340 = vmatpush1.msra.mxu0 0.0
          %341 = vmatprep.subr.mxu0 0.0
          %342 = vmatpush1.msra.mxu0 0.0
          %343 = vmatprep.subr.mxu0 0.0
          %344 = vmatpush1.msra.mxu0 0.0
          %345 = vmatprep.subr.mxu0 0.0
          %346 = vmatpush1.msra.mxu0 %v309
          %347 = vmatprep.subr.mxu0 0.0
          %348 = vmatpush1.msra.mxu0 %v307
          %349 = vmatprep.subr.mxu0 0.0
          %350 = vmatpush1.msra.mxu0 %v305
          %351 = vmatprep.subr.mxu0 0.0
          %352 = vmatpush1.msra.mxu0 %v303
          %353 = vmatprep.subr.mxu0 0.0
          %354 = vmatpush2.msra.mxu0 0.0
          %355 = vmatprep.subr.mxu0 0.0
          %356 = vmatpush2.msra.mxu0 0.0
          %357 = vmatprep.subr.mxu0 0.0
          %358 = vmatpush2.msra.mxu0 0.0
          %359 = vmatprep.subr.mxu0 0.0
          %360 = vmatpush2.msra.mxu0 0.0
          %361 = vmatprep.subr.mxu0 0.0
          %362 = vmatpush2.msra.mxu0 0.0
          %363 = vmatprep.subr.mxu0 0.0
          %364 = vmatpush2.msra.mxu0 0.0
          %365 = vmatprep.subr.mxu0 0.0
          %366 = vmatpush2.msra.mxu0 0.0
          %367 = vmatprep.subr.mxu0 0.0
          %368 = vmatpush2.msra.mxu0 0.0
          %369 = vmatprep.subr.mxu0 0.0
          %370 = vmatpush2.msra.mxu0 0.0
          %371 = vmatprep.subr.mxu0 0.0
          %372 = vmatpush2.msra.mxu0 0.0
          %373 = vmatprep.subr.mxu0 0.0
          %374 = vmatpush2.msra.mxu0 0.0
          %375 = vmatprep.subr.mxu0 0.0
          %376 = vmatpush2.msra.mxu0 0.0
          %377 = vmatprep.subr.mxu0 0.0
          %378 = vmatpush2.msra.mxu0 0.0
          %379 = vmatprep.subr.mxu0 0.0
          %380 = vmatpush2.msra.mxu0 0.0
          %381 = vmatprep.subr.mxu0 0.0
          %382 = vmatpush2.msra.mxu0 0.0
          %383 = vmatprep.subr.mxu0 0.0
          %384 = vmatpush2.msra.mxu0 0.0
          %385 = vmatprep.mubr.f32.mxu0 0.0
          %386 = vmatmul.mubr.f32.gmra.mxu0 %v319
          %v387 = vpop.f32.mrf.mxu0
          %v388 = vadd.f32 %v315, %v387
          %v389 = vpop.f32.mrf.mxu0
          %390 = vdwg.mxu0
          %391 = vst.msk [vmem:[#allocation2] sm:$0xff] %vm317, %v388
          %393 = vrot.lane.b32.xlu0 %v388, 96
          %v394 = vpop.permute.xlu0 %393
          %396 = vst.msk [vmem:[#allocation3] sm:$0xff] %vm317, %v394
        $region56: #{tpu_custom_call.1} parent=39 // pred_fallthru
          _
        %s397 = smul.u32 %s28, 8
        %s398 = scalar_lea.vmem %s248, %s397 [#allocation5]
        %v399 = vld [vmem:[%s398] sm:$0xff]
        %v400 = vld [vmem:[#allocation8] sm:$0xff]
        %v401 = vld [vmem:[#allocation8 + $0x8] sm:$0xff]
        %v402 = vld [vmem:[#allocation8 + $0x10] sm:$0xff]
        %v403 = vld [vmem:[#allocation8 + $0x18] sm:$0xff]
        %v404 = vld [vmem:[%s2] sm:$0x1]
        %v406 = vlaneseq
        %v407 = vshrl.u32 %v406, 7
        %v408 = vsub.s32 0, %v407
        %v409 = vrot.slane %v404, %v408
        %vm411 = vcmask 261120
        %v413 = vsel %vm411, %v399, 0
        %415 = vmatprep.subr.mxu0 0.0
        %416 = vmatpush1.msra.mxu0 0.0
        %417 = vmatprep.subr.mxu0 0.0
        %418 = vmatpush1.msra.mxu0 0.0
        %419 = vmatprep.subr.mxu0 0.0
        %420 = vmatpush1.msra.mxu0 0.0
        %421 = vmatprep.subr.mxu0 0.0
        %422 = vmatpush1.msra.mxu0 0.0
        %423 = vmatprep.subr.mxu0 0.0
        %424 = vmatpush1.msra.mxu0 0.0
        %425 = vmatprep.subr.mxu0 0.0
        %426 = vmatpush1.msra.mxu0 0.0
        %427 = vmatprep.subr.mxu0 0.0
        %428 = vmatpush1.msra.mxu0 0.0
        %429 = vmatprep.subr.mxu0 0.0
        %430 = vmatpush1.msra.mxu0 0.0
        %431 = vmatprep.subr.mxu0 0.0
        %432 = vmatpush1.msra.mxu0 0.0
        %433 = vmatprep.subr.mxu0 0.0
        %434 = vmatpush1.msra.mxu0 0.0
        %435 = vmatprep.subr.mxu0 0.0
        %436 = vmatpush1.msra.mxu0 0.0
        %437 = vmatprep.subr.mxu0 0.0
        %438 = vmatpush1.msra.mxu0 0.0
        %439 = vmatprep.subr.mxu0 0.0
        %440 = vmatpush1.msra.mxu0 %v403
        %441 = vmatprep.subr.mxu0 0.0
        %442 = vmatpush1.msra.mxu0 %v402
        %443 = vmatprep.subr.mxu0 0.0
        %444 = vmatpush1.msra.mxu0 %v401
        %445 = vmatprep.subr.mxu0 0.0
        %446 = vmatpush1.msra.mxu0 %v400
        %447 = vmatprep.subr.mxu0 0.0
        %448 = vmatpush2.msra.mxu0 0.0
        %449 = vmatprep.subr.mxu0 0.0
        %450 = vmatpush2.msra.mxu0 0.0
        %451 = vmatprep.subr.mxu0 0.0
        %452 = vmatpush2.msra.mxu0 0.0
        %453 = vmatprep.subr.mxu0 0.0
        %454 = vmatpush2.msra.mxu0 0.0
        %455 = vmatprep.subr.mxu0 0.0
        %456 = vmatpush2.msra.mxu0 0.0
        %457 = vmatprep.subr.mxu0 0.0
        %458 = vmatpush2.msra.mxu0 0.0
        %459 = vmatprep.subr.mxu0 0.0
        %460 = vmatpush2.msra.mxu0 0.0
        %461 = vmatprep.subr.mxu0 0.0
        %462 = vmatpush2.msra.mxu0 0.0
        %463 = vmatprep.subr.mxu0 0.0
        %464 = vmatpush2.msra.mxu0 0.0
        %465 = vmatprep.subr.mxu0 0.0
        %466 = vmatpush2.msra.mxu0 0.0
        %467 = vmatprep.subr.mxu0 0.0
        %468 = vmatpush2.msra.mxu0 0.0
        %469 = vmatprep.subr.mxu0 0.0
        %470 = vmatpush2.msra.mxu0 0.0
        %471 = vmatprep.subr.mxu0 0.0
        %472 = vmatpush2.msra.mxu0 0.0
        %473 = vmatprep.subr.mxu0 0.0
        %474 = vmatpush2.msra.mxu0 0.0
        %475 = vmatprep.subr.mxu0 0.0
        %476 = vmatpush2.msra.mxu0 0.0
        %477 = vmatprep.subr.mxu0 0.0
        %478 = vmatpush2.msra.mxu0 0.0
        %479 = vmatprep.mubr.f32.mxu0 0.0
        %480 = vmatmul.mubr.f32.gmra.mxu0 %v413
        %v481 = vpop.f32.mrf.mxu0
        %v482 = vadd.f32 %v409, %v481
        %v483 = vpop.f32.mrf.mxu0
        %484 = vdwg.mxu0
        %v485 = vld [vmem:[#allocation2] sm:$0xff]
        %v486 = vld [vmem:[#allocation3] sm:$0xff]
        %vm487 = vcmask 64512
        %v489 = vsel %vm487, %v482, 0
        %v492 = vsel %vm487, %v485, 0
        %494 = vmatprep.subr.mxu0 0.0
        %495 = vmatpush1.xpose.msra.mxu0 0.0
        %496 = vmatprep.subr.mxu0 0.0
        %497 = vmatpush1.xpose.msra.mxu0 0.0
        %498 = vmatprep.subr.mxu0 0.0
        %499 = vmatpush1.xpose.msra.mxu0 0.0
        %500 = vmatprep.subr.mxu0 0.0
        %501 = vmatpush1.xpose.msra.mxu0 0.0
        %502 = vmatprep.subr.mxu0 0.0
        %503 = vmatpush1.xpose.msra.mxu0 0.0
        %504 = vmatprep.subr.mxu0 0.0
        %505 = vmatpush1.xpose.msra.mxu0 0.0
        %506 = vmatprep.subr.mxu0 0.0
        %507 = vmatpush1.xpose.msra.mxu0 0.0
        %508 = vmatprep.subr.mxu0 0.0
        %509 = vmatpush1.xpose.msra.mxu0 0.0
        %510 = vmatprep.subr.mxu0 0.0
        %511 = vmatpush1.xpose.msra.mxu0 0.0
        %512 = vmatprep.subr.mxu0 0.0
        %513 = vmatpush1.xpose.msra.mxu0 0.0
        %514 = vmatprep.subr.mxu0 0.0
        %515 = vmatpush1.xpose.msra.mxu0 0.0
        %516 = vmatprep.subr.mxu0 0.0
        %517 = vmatpush1.xpose.msra.mxu0 0.0
        %518 = vmatprep.subr.mxu0 0.0
        %519 = vmatpush1.xpose.msra.mxu0 0.0
        %520 = vmatprep.subr.mxu0 0.0
        %521 = vmatpush1.xpose.msra.mxu0 0.0
        %522 = vmatprep.subr.mxu0 0.0
        %523 = vmatpush1.xpose.msra.mxu0 0.0
        %524 = vmatprep.subr.mxu0 0.0
        %525 = vmatpush1.xpose.msra.mxu0 %v492
        %526 = vmatprep.subr.mxu0 0.0
        %527 = vmatpush2.xpose.msra.mxu0 0.0
        %528 = vmatprep.subr.mxu0 0.0
        %529 = vmatpush2.xpose.msra.mxu0 0.0
        %530 = vmatprep.subr.mxu0 0.0
        %531 = vmatpush2.xpose.msra.mxu0 0.0
        %532 = vmatprep.subr.mxu0 0.0
        %533 = vmatpush2.xpose.msra.mxu0 0.0
        %534 = vmatprep.subr.mxu0 0.0
        %535 = vmatpush2.xpose.msra.mxu0 0.0
        %536 = vmatprep.subr.mxu0 0.0
        %537 = vmatpush2.xpose.msra.mxu0 0.0
        %538 = vmatprep.subr.mxu0 0.0
        %539 = vmatpush2.xpose.msra.mxu0 0.0
        %540 = vmatprep.subr.mxu0 0.0
        %541 = vmatpush2.xpose.msra.mxu0 0.0
        %542 = vmatprep.subr.mxu0 0.0
        %543 = vmatpush2.xpose.msra.mxu0 0.0
        %544 = vmatprep.subr.mxu0 0.0
        %545 = vmatpush2.xpose.msra.mxu0 0.0
        %546 = vmatprep.subr.mxu0 0.0
        %547 = vmatpush2.xpose.msra.mxu0 0.0
        %548 = vmatprep.subr.mxu0 0.0
        %549 = vmatpush2.xpose.msra.mxu0 0.0
        %550 = vmatprep.subr.mxu0 0.0
        %551 = vmatpush2.xpose.msra.mxu0 0.0
        %552 = vmatprep.subr.mxu0 0.0
        %553 = vmatpush2.xpose.msra.mxu0 0.0
        %554 = vmatprep.subr.mxu0 0.0
        %555 = vmatpush2.xpose.msra.mxu0 0.0
        %556 = vmatprep.subr.mxu0 0.0
        %557 = vmatpush2.xpose.msra.mxu0 0.0
        %558 = vmatprep.mubr.f32.mxu0 0.0
        %559 = vmatmul.mubr.f32.gmra.mxu0 %v489
        %v560 = vpop.f32.mrf.mxu0
        %v561 = vadd.f32 0.0, %v560
        %v562 = vpop.f32.mrf.mxu0
        %563 = vdwg.mxu0
        %v564 = vsel %vm487, %v561, -inf
        %565 = vmax.xlane.f32.xlu0 %v564
        %v566 = vpop.xlane.xlu0 %565
        %v567 = vsub.f32 %v561, %v566
        %v568 = vmul.f32 %v567, 1.442695
        %v569 = vpow.pop %v568
        %v570 = vsel %vm487, %v569, 0.0
        %571 = vadd.xlane.f32.xlu0 %v570
        %v572 = vpop.xlane.xlu0 %571
        %v573 = vrcp.pop %v572
        %v574 = vmul.f32 %v569, %v573
        %v576 = vsel %vm487, %v574, 0
        %578 = vmatprep.subr.mxu0 0.0
        %579 = vmatpush1.msra.mxu0 0.0
        %580 = vmatprep.subr.mxu0 0.0
        %581 = vmatpush1.msra.mxu0 0.0
        %582 = vmatprep.subr.mxu0 0.0
        %583 = vmatpush1.msra.mxu0 0.0
        %584 = vmatprep.subr.mxu0 0.0
        %585 = vmatpush1.msra.mxu0 0.0
        %586 = vmatprep.subr.mxu0 0.0
        %587 = vmatpush1.msra.mxu0 0.0
        %588 = vmatprep.subr.mxu0 0.0
        %589 = vmatpush1.msra.mxu0 0.0
        %590 = vmatprep.subr.mxu0 0.0
        %591 = vmatpush1.msra.mxu0 0.0
        %592 = vmatprep.subr.mxu0 0.0
        %593 = vmatpush1.msra.mxu0 0.0
        %594 = vmatprep.subr.mxu0 0.0
        %595 = vmatpush1.msra.mxu0 0.0
        %596 = vmatprep.subr.mxu0 0.0
        %597 = vmatpush1.msra.mxu0 0.0
        %598 = vmatprep.subr.mxu0 0.0
        %599 = vmatpush1.msra.mxu0 0.0
        %600 = vmatprep.subr.mxu0 0.0
        %601 = vmatpush1.msra.mxu0 0.0
        %602 = vmatprep.subr.mxu0 0.0
        %603 = vmatpush1.msra.mxu0 0.0
        %604 = vmatprep.subr.mxu0 0.0
        %605 = vmatpush1.msra.mxu0 0.0
        %606 = vmatprep.subr.mxu0 0.0
        %607 = vmatpush1.msra.mxu0 0.0
        %608 = vmatprep.subr.mxu0 0.0
        %609 = vmatpush1.msra.mxu0 %v486
        %610 = vmatprep.subr.mxu0 0.0
        %611 = vmatpush2.msra.mxu0 0.0
        %612 = vmatprep.subr.mxu0 0.0
        %613 = vmatpush2.msra.mxu0 0.0
        %614 = vmatprep.subr.mxu0 0.0
        %615 = vmatpush2.msra.mxu0 0.0
        %616 = vmatprep.subr.mxu0 0.0
        %617 = vmatpush2.msra.mxu0 0.0
        %618 = vmatprep.subr.mxu0 0.0
        %619 = vmatpush2.msra.mxu0 0.0
        %620 = vmatprep.subr.mxu0 0.0
        %621 = vmatpush2.msra.mxu0 0.0
        %622 = vmatprep.subr.mxu0 0.0
        %623 = vmatpush2.msra.mxu0 0.0
        %624 = vmatprep.subr.mxu0 0.0
        %625 = vmatpush2.msra.mxu0 0.0
        %626 = vmatprep.subr.mxu0 0.0
        %627 = vmatpush2.msra.mxu0 0.0
        %628 = vmatprep.subr.mxu0 0.0
        %629 = vmatpush2.msra.mxu0 0.0
        %630 = vmatprep.subr.mxu0 0.0
        %631 = vmatpush2.msra.mxu0 0.0
        %632 = vmatprep.subr.mxu0 0.0
        %633 = vmatpush2.msra.mxu0 0.0
        %634 = vmatprep.subr.mxu0 0.0
        %635 = vmatpush2.msra.mxu0 0.0
        %636 = vmatprep.subr.mxu0 0.0
        %637 = vmatpush2.msra.mxu0 0.0
        %638 = vmatprep.subr.mxu0 0.0
        %639 = vmatpush2.msra.mxu0 0.0
        %640 = vmatprep.subr.mxu0 0.0
        %641 = vmatpush2.msra.mxu0 0.0
        %642 = vmatprep.mubr.f32.mxu0 0.0
        %643 = vmatmul.mubr.f32.gmra.mxu0 %v576
        %v644 = vpop.f32.mrf.mxu0
        %v645 = vadd.f32 0.0, %v644
        %v646 = vpop.f32.mrf.mxu0
        %647 = vdwg.mxu0
        %648 = vst.msk [vmem:[#allocation4] sm:$0xff] %vm487, %v645
        %v649 = vld [vmem:[#allocation2] sm:$0xff]
        %v650 = vld [vmem:[#allocation3] sm:$0xff]
        %651 = vrot.lane.b32.xlu0 %v482, 120
        %v652 = vpop.permute.xlu0 %651
        %654 = vrot.lane.b32.xlu0 %v649, 120
        %v655 = vpop.permute.xlu0 %654
        %v656 = vsel %vm487, %v652, 0
        %v658 = vsel %vm487, %v655, 0
        %660 = vmatprep.subr.mxu0 0.0
        %661 = vmatpush1.xpose.msra.mxu0 0.0
        %662 = vmatprep.subr.mxu0 0.0
        %663 = vmatpush1.xpose.msra.mxu0 0.0
        %664 = vmatprep.subr.mxu0 0.0
        %665 = vmatpush1.xpose.msra.mxu0 0.0
        %666 = vmatprep.subr.mxu0 0.0
        %667 = vmatpush1.xpose.msra.mxu0 0.0
        %668 = vmatprep.subr.mxu0 0.0
        %669 = vmatpush1.xpose.msra.mxu0 0.0
        %670 = vmatprep.subr.mxu0 0.0
        %671 = vmatpush1.xpose.msra.mxu0 0.0
        %672 = vmatprep.subr.mxu0 0.0
        %673 = vmatpush1.xpose.msra.mxu0 0.0
        %674 = vmatprep.subr.mxu0 0.0
        %675 = vmatpush1.xpose.msra.mxu0 0.0
        %676 = vmatprep.subr.mxu0 0.0
        %677 = vmatpush1.xpose.msra.mxu0 0.0
        %678 = vmatprep.subr.mxu0 0.0
        %679 = vmatpush1.xpose.msra.mxu0 0.0
        %680 = vmatprep.subr.mxu0 0.0
        %681 = vmatpush1.xpose.msra.mxu0 0.0
        %682 = vmatprep.subr.mxu0 0.0
        %683 = vmatpush1.xpose.msra.mxu0 0.0
        %684 = vmatprep.subr.mxu0 0.0
        %685 = vmatpush1.xpose.msra.mxu0 0.0
        %686 = vmatprep.subr.mxu0 0.0
        %687 = vmatpush1.xpose.msra.mxu0 0.0
        %688 = vmatprep.subr.mxu0 0.0
        %689 = vmatpush1.xpose.msra.mxu0 0.0
        %690 = vmatprep.subr.mxu0 0.0
        %691 = vmatpush1.xpose.msra.mxu0 %v658
        %692 = vmatprep.subr.mxu0 0.0
        %693 = vmatpush2.xpose.msra.mxu0 0.0
        %694 = vmatprep.subr.mxu0 0.0
        %695 = vmatpush2.xpose.msra.mxu0 0.0
        %696 = vmatprep.subr.mxu0 0.0
        %697 = vmatpush2.xpose.msra.mxu0 0.0
        %698 = vmatprep.subr.mxu0 0.0
        %699 = vmatpush2.xpose.msra.mxu0 0.0
        %700 = vmatprep.subr.mxu0 0.0
        %701 = vmatpush2.xpose.msra.mxu0 0.0
        %702 = vmatprep.subr.mxu0 0.0
        %703 = vmatpush2.xpose.msra.mxu0 0.0
        %704 = vmatprep.subr.mxu0 0.0
        %705 = vmatpush2.xpose.msra.mxu0 0.0
        %706 = vmatprep.subr.mxu0 0.0
        %707 = vmatpush2.xpose.msra.mxu0 0.0
        %708 = vmatprep.subr.mxu0 0.0
        %709 = vmatpush2.xpose.msra.mxu0 0.0
        %710 = vmatprep.subr.mxu0 0.0
        %711 = vmatpush2.xpose.msra.mxu0 0.0
        %712 = vmatprep.subr.mxu0 0.0
        %713 = vmatpush2.xpose.msra.mxu0 0.0
        %714 = vmatprep.subr.mxu0 0.0
        %715 = vmatpush2.xpose.msra.mxu0 0.0
        %716 = vmatprep.subr.mxu0 0.0
        %717 = vmatpush2.xpose.msra.mxu0 0.0
        %718 = vmatprep.subr.mxu0 0.0
        %719 = vmatpush2.xpose.msra.mxu0 0.0
        %720 = vmatprep.subr.mxu0 0.0
        %721 = vmatpush2.xpose.msra.mxu0 0.0
        %722 = vmatprep.subr.mxu0 0.0
        %723 = vmatpush2.xpose.msra.mxu0 0.0
        %724 = vmatprep.mubr.f32.mxu0 0.0
        %725 = vmatmul.mubr.f32.gmra.mxu0 %v656
        %v726 = vpop.f32.mrf.mxu0
        %v727 = vadd.f32 0.0, %v726
        %v728 = vpop.f32.mrf.mxu0
        %729 = vdwg.mxu0
        %v730 = vsel %vm487, %v727, -inf
        %731 = vmax.xlane.f32.xlu0 %v730
        %v732 = vpop.xlane.xlu0 %731
        %v733 = vsub.f32 %v727, %v732
        %v734 = vmul.f32 %v733, 1.442695
        %v735 = vpow.pop %v734
        %v736 = vsel %vm487, %v735, 0.0
        %737 = vadd.xlane.f32.xlu0 %v736
        %v738 = vpop.xlane.xlu0 %737
        %v739 = vrcp.pop %v738
        %v740 = vmul.f32 %v735, %v739
        %742 = vrot.lane.b32.xlu0 %v650, 120
        %v743 = vpop.permute.xlu0 %742
        %v746 = vsel %vm487, %v740, 0
        %748 = vmatprep.subr.mxu0 0.0
        %749 = vmatpush1.msra.mxu0 0.0
        %750 = vmatprep.subr.mxu0 0.0
        %751 = vmatpush1.msra.mxu0 0.0
        %752 = vmatprep.subr.mxu0 0.0
        %753 = vmatpush1.msra.mxu0 0.0
        %754 = vmatprep.subr.mxu0 0.0
        %755 = vmatpush1.msra.mxu0 0.0
        %756 = vmatprep.subr.mxu0 0.0
        %757 = vmatpush1.msra.mxu0 0.0
        %758 = vmatprep.subr.mxu0 0.0
        %759 = vmatpush1.msra.mxu0 0.0
        %760 = vmatprep.subr.mxu0 0.0
        %761 = vmatpush1.msra.mxu0 0.0
        %762 = vmatprep.subr.mxu0 0.0
        %763 = vmatpush1.msra.mxu0 0.0
        %764 = vmatprep.subr.mxu0 0.0
        %765 = vmatpush1.msra.mxu0 0.0
        %766 = vmatprep.subr.mxu0 0.0
        %767 = vmatpush1.msra.mxu0 0.0
        %768 = vmatprep.subr.mxu0 0.0
        %769 = vmatpush1.msra.mxu0 0.0
        %770 = vmatprep.subr.mxu0 0.0
        %771 = vmatpush1.msra.mxu0 0.0
        %772 = vmatprep.subr.mxu0 0.0
        %773 = vmatpush1.msra.mxu0 0.0
        %774 = vmatprep.subr.mxu0 0.0
        %775 = vmatpush1.msra.mxu0 0.0
        %776 = vmatprep.subr.mxu0 0.0
        %777 = vmatpush1.msra.mxu0 0.0
        %778 = vmatprep.subr.mxu0 0.0
        %779 = vmatpush1.msra.mxu0 %v743
        %780 = vmatprep.subr.mxu0 0.0
        %781 = vmatpush2.msra.mxu0 0.0
        %782 = vmatprep.subr.mxu0 0.0
        %783 = vmatpush2.msra.mxu0 0.0
        %784 = vmatprep.subr.mxu0 0.0
        %785 = vmatpush2.msra.mxu0 0.0
        %786 = vmatprep.subr.mxu0 0.0
        %787 = vmatpush2.msra.mxu0 0.0
        %788 = vmatprep.subr.mxu0 0.0
        %789 = vmatpush2.msra.mxu0 0.0
        %790 = vmatprep.subr.mxu0 0.0
        %791 = vmatpush2.msra.mxu0 0.0
        %792 = vmatprep.subr.mxu0 0.0
        %793 = vmatpush2.msra.mxu0 0.0
        %794 = vmatprep.subr.mxu0 0.0
        %795 = vmatpush2.msra.mxu0 0.0
        %796 = vmatprep.subr.mxu0 0.0
        %797 = vmatpush2.msra.mxu0 0.0
        %798 = vmatprep.subr.mxu0 0.0
        %799 = vmatpush2.msra.mxu0 0.0
        %800 = vmatprep.subr.mxu0 0.0
        %801 = vmatpush2.msra.mxu0 0.0
        %802 = vmatprep.subr.mxu0 0.0
        %803 = vmatpush2.msra.mxu0 0.0
        %804 = vmatprep.subr.mxu0 0.0
        %805 = vmatpush2.msra.mxu0 0.0
        %806 = vmatprep.subr.mxu0 0.0
        %807 = vmatpush2.msra.mxu0 0.0
        %808 = vmatprep.subr.mxu0 0.0
        %809 = vmatpush2.msra.mxu0 0.0
        %810 = vmatprep.subr.mxu0 0.0
        %811 = vmatpush2.msra.mxu0 0.0
        %812 = vmatprep.mubr.f32.mxu0 0.0
        %813 = vmatmul.mubr.f32.gmra.mxu0 %v746
        %v814 = vpop.f32.mrf.mxu0
        %v815 = vadd.f32 0.0, %v814
        %v816 = vpop.f32.mrf.mxu0
        %817 = vdwg.mxu0
        %819 = vrot.lane.b32.xlu0 %v815, 8
        %v820 = vpop.permute.xlu0 %819
        %vm822 = vcmask 130112
        %823 = vst.msk [vmem:[#allocation4] sm:$0xff] %vm822, %v820
        %v824 = vld [vmem:[#allocation2] sm:$0xff]
        %v825 = vld [vmem:[#allocation3] sm:$0xff]
        %826 = vrot.lane.b32.xlu0 %v482, 112
        %v827 = vpop.permute.xlu0 %826
        %829 = vrot.lane.b32.xlu0 %v824, 112
        %v830 = vpop.permute.xlu0 %829
        %v831 = vsel %vm487, %v827, 0
        %v833 = vsel %vm487, %v830, 0
        %835 = vmatprep.subr.mxu0 0.0
        %836 = vmatpush1.xpose.msra.mxu0 0.0
        %837 = vmatprep.subr.mxu0 0.0
        %838 = vmatpush1.xpose.msra.mxu0 0.0
        %839 = vmatprep.subr.mxu0 0.0
        %840 = vmatpush1.xpose.msra.mxu0 0.0
        %841 = vmatprep.subr.mxu0 0.0
        %842 = vmatpush1.xpose.msra.mxu0 0.0
        %843 = vmatprep.subr.mxu0 0.0
        %844 = vmatpush1.xpose.msra.mxu0 0.0
        %845 = vmatprep.subr.mxu0 0.0
        %846 = vmatpush1.xpose.msra.mxu0 0.0
        %847 = vmatprep.subr.mxu0 0.0
        %848 = vmatpush1.xpose.msra.mxu0 0.0
        %849 = vmatprep.subr.mxu0 0.0
        %850 = vmatpush1.xpose.msra.mxu0 0.0
        %851 = vmatprep.subr.mxu0 0.0
        %852 = vmatpush1.xpose.msra.mxu0 0.0
        %853 = vmatprep.subr.mxu0 0.0
        %854 = vmatpush1.xpose.msra.mxu0 0.0
        %855 = vmatprep.subr.mxu0 0.0
        %856 = vmatpush1.xpose.msra.mxu0 0.0
        %857 = vmatprep.subr.mxu0 0.0
        %858 = vmatpush1.xpose.msra.mxu0 0.0
        %859 = vmatprep.subr.mxu0 0.0
        %860 = vmatpush1.xpose.msra.mxu0 0.0
        %861 = vmatprep.subr.mxu0 0.0
        %862 = vmatpush1.xpose.msra.mxu0 0.0
        %863 = vmatprep.subr.mxu0 0.0
        %864 = vmatpush1.xpose.msra.mxu0 0.0
        %865 = vmatprep.subr.mxu0 0.0
        %866 = vmatpush1.xpose.msra.mxu0 %v833
        %867 = vmatprep.subr.mxu0 0.0
        %868 = vmatpush2.xpose.msra.mxu0 0.0
        %869 = vmatprep.subr.mxu0 0.0
        %870 = vmatpush2.xpose.msra.mxu0 0.0
        %871 = vmatprep.subr.mxu0 0.0
        %872 = vmatpush2.xpose.msra.mxu0 0.0
        %873 = vmatprep.subr.mxu0 0.0
        %874 = vmatpush2.xpose.msra.mxu0 0.0
        %875 = vmatprep.subr.mxu0 0.0
        %876 = vmatpush2.xpose.msra.mxu0 0.0
        %877 = vmatprep.subr.mxu0 0.0
        %878 = vmatpush2.xpose.msra.mxu0 0.0
        %879 = vmatprep.subr.mxu0 0.0
        %880 = vmatpush2.xpose.msra.mxu0 0.0
        %881 = vmatprep.subr.mxu0 0.0
        %882 = vmatpush2.xpose.msra.mxu0 0.0
        %883 = vmatprep.subr.mxu0 0.0
        %884 = vmatpush2.xpose.msra.mxu0 0.0
        %885 = vmatprep.subr.mxu0 0.0
        %886 = vmatpush2.xpose.msra.mxu0 0.0
        %887 = vmatprep.subr.mxu0 0.0
        %888 = vmatpush2.xpose.msra.mxu0 0.0
        %889 = vmatprep.subr.mxu0 0.0
        %890 = vmatpush2.xpose.msra.mxu0 0.0
        %891 = vmatprep.subr.mxu0 0.0
        %892 = vmatpush2.xpose.msra.mxu0 0.0
        %893 = vmatprep.subr.mxu0 0.0
        %894 = vmatpush2.xpose.msra.mxu0 0.0
        %895 = vmatprep.subr.mxu0 0.0
        %896 = vmatpush2.xpose.msra.mxu0 0.0
        %897 = vmatprep.subr.mxu0 0.0
        %898 = vmatpush2.xpose.msra.mxu0 0.0
        %899 = vmatprep.mubr.f32.mxu0 0.0
        %900 = vmatmul.mubr.f32.gmra.mxu0 %v831
        %v901 = vpop.f32.mrf.mxu0
        %v902 = vadd.f32 0.0, %v901
        %v903 = vpop.f32.mrf.mxu0
        %904 = vdwg.mxu0
        %v905 = vsel %vm487, %v902, -inf
        %906 = vmax.xlane.f32.xlu0 %v905
        %v907 = vpop.xlane.xlu0 %906
        %v908 = vsub.f32 %v902, %v907
        %v909 = vmul.f32 %v908, 1.442695
        %v910 = vpow.pop %v909
        %v911 = vsel %vm487, %v910, 0.0
        %912 = vadd.xlane.f32.xlu0 %v911
        %v913 = vpop.xlane.xlu0 %912
        %v914 = vrcp.pop %v913
        %v915 = vmul.f32 %v910, %v914
        %917 = vrot.lane.b32.xlu0 %v825, 112
        %v918 = vpop.permute.xlu0 %917
        %v921 = vsel %vm487, %v915, 0
        %923 = vmatprep.subr.mxu0 0.0
        %924 = vmatpush1.msra.mxu0 0.0
        %925 = vmatprep.subr.mxu0 0.0
        %926 = vmatpush1.msra.mxu0 0.0
        %927 = vmatprep.subr.mxu0 0.0
        %928 = vmatpush1.msra.mxu0 0.0
        %929 = vmatprep.subr.mxu0 0.0
        %930 = vmatpush1.msra.mxu0 0.0
        %931 = vmatprep.subr.mxu0 0.0
        %932 = vmatpush1.msra.mxu0 0.0
        %933 = vmatprep.subr.mxu0 0.0
        %934 = vmatpush1.msra.mxu0 0.0
        %935 = vmatprep.subr.mxu0 0.0
        %936 = vmatpush1.msra.mxu0 0.0
        %937 = vmatprep.subr.mxu0 0.0
        %938 = vmatpush1.msra.mxu0 0.0
        %939 = vmatprep.subr.mxu0 0.0
        %940 = vmatpush1.msra.mxu0 0.0
        %941 = vmatprep.subr.mxu0 0.0
        %942 = vmatpush1.msra.mxu0 0.0
        %943 = vmatprep.subr.mxu0 0.0
        %944 = vmatpush1.msra.mxu0 0.0
        %945 = vmatprep.subr.mxu0 0.0
        %946 = vmatpush1.msra.mxu0 0.0
        %947 = vmatprep.subr.mxu0 0.0
        %948 = vmatpush1.msra.mxu0 0.0
        %949 = vmatprep.subr.mxu0 0.0
        %950 = vmatpush1.msra.mxu0 0.0
        %951 = vmatprep.subr.mxu0 0.0
        %952 = vmatpush1.msra.mxu0 0.0
        %953 = vmatprep.subr.mxu0 0.0
        %954 = vmatpush1.msra.mxu0 %v918
        %955 = vmatprep.subr.mxu0 0.0
        %956 = vmatpush2.msra.mxu0 0.0
        %957 = vmatprep.subr.mxu0 0.0
        %958 = vmatpush2.msra.mxu0 0.0
        %959 = vmatprep.subr.mxu0 0.0
        %960 = vmatpush2.msra.mxu0 0.0
        %961 = vmatprep.subr.mxu0 0.0
        %962 = vmatpush2.msra.mxu0 0.0
        %963 = vmatprep.subr.mxu0 0.0
        %964 = vmatpush2.msra.mxu0 0.0
        %965 = vmatprep.subr.mxu0 0.0
        %966 = vmatpush2.msra.mxu0 0.0
        %967 = vmatprep.subr.mxu0 0.0
        %968 = vmatpush2.msra.mxu0 0.0
        %969 = vmatprep.subr.mxu0 0.0
        %970 = vmatpush2.msra.mxu0 0.0
        %971 = vmatprep.subr.mxu0 0.0
        %972 = vmatpush2.msra.mxu0 0.0
        %973 = vmatprep.subr.mxu0 0.0
        %974 = vmatpush2.msra.mxu0 0.0
        %975 = vmatprep.subr.mxu0 0.0
        %976 = vmatpush2.msra.mxu0 0.0
        %977 = vmatprep.subr.mxu0 0.0
        %978 = vmatpush2.msra.mxu0 0.0
        %979 = vmatprep.subr.mxu0 0.0
        %980 = vmatpush2.msra.mxu0 0.0
        %981 = vmatprep.subr.mxu0 0.0
        %982 = vmatpush2.msra.mxu0 0.0
        %983 = vmatprep.subr.mxu0 0.0
        %984 = vmatpush2.msra.mxu0 0.0
        %985 = vmatprep.subr.mxu0 0.0
        %986 = vmatpush2.msra.mxu0 0.0
        %987 = vmatprep.mubr.f32.mxu0 0.0
        %988 = vmatmul.mubr.f32.gmra.mxu0 %v921
        %v989 = vpop.f32.mrf.mxu0
        %v990 = vadd.f32 0.0, %v989
        %v991 = vpop.f32.mrf.mxu0
        %992 = vdwg.mxu0
        %994 = vrot.lane.b32.xlu0 %v990, 16
        %v995 = vpop.permute.xlu0 %994
        %vm997 = vcmask 195712
        %998 = vst.msk [vmem:[#allocation4] sm:$0xff] %vm997, %v995
        %v999 = vld [vmem:[#allocation2] sm:$0xff]
        %v1000 = vld [vmem:[#allocation3] sm:$0xff]
        %1001 = vrot.lane.b32.xlu0 %v482, 104
        %v1002 = vpop.permute.xlu0 %1001
        %1004 = vrot.lane.b32.xlu0 %v999, 104
        %v1005 = vpop.permute.xlu0 %1004
        %v1006 = vsel %vm487, %v1002, 0
        %v1008 = vsel %vm487, %v1005, 0
        %1010 = vmatprep.subr.mxu0 0.0
        %1011 = vmatpush1.xpose.msra.mxu0 0.0
        %1012 = vmatprep.subr.mxu0 0.0
        %1013 = vmatpush1.xpose.msra.mxu0 0.0
        %1014 = vmatprep.subr.mxu0 0.0
        %1015 = vmatpush1.xpose.msra.mxu0 0.0
        %1016 = vmatprep.subr.mxu0 0.0
        %1017 = vmatpush1.xpose.msra.mxu0 0.0
        %1018 = vmatprep.subr.mxu0 0.0
        %1019 = vmatpush1.xpose.msra.mxu0 0.0
        %1020 = vmatprep.subr.mxu0 0.0
        %1021 = vmatpush1.xpose.msra.mxu0 0.0
        %1022 = vmatprep.subr.mxu0 0.0
        %1023 = vmatpush1.xpose.msra.mxu0 0.0
        %1024 = vmatprep.subr.mxu0 0.0
        %1025 = vmatpush1.xpose.msra.mxu0 0.0
        %1026 = vmatprep.subr.mxu0 0.0
        %1027 = vmatpush1.xpose.msra.mxu0 0.0
        %1028 = vmatprep.subr.mxu0 0.0
        %1029 = vmatpush1.xpose.msra.mxu0 0.0
        %1030 = vmatprep.subr.mxu0 0.0
        %1031 = vmatpush1.xpose.msra.mxu0 0.0
        %1032 = vmatprep.subr.mxu0 0.0
        %1033 = vmatpush1.xpose.msra.mxu0 0.0
        %1034 = vmatprep.subr.mxu0 0.0
        %1035 = vmatpush1.xpose.msra.mxu0 0.0
        %1036 = vmatprep.subr.mxu0 0.0
        %1037 = vmatpush1.xpose.msra.mxu0 0.0
        %1038 = vmatprep.subr.mxu0 0.0
        %1039 = vmatpush1.xpose.msra.mxu0 0.0
        %1040 = vmatprep.subr.mxu0 0.0
        %1041 = vmatpush1.xpose.msra.mxu0 %v1008
        %1042 = vmatprep.subr.mxu0 0.0
        %1043 = vmatpush2.xpose.msra.mxu0 0.0
        %1044 = vmatprep.subr.mxu0 0.0
        %1045 = vmatpush2.xpose.msra.mxu0 0.0
        %1046 = vmatprep.subr.mxu0 0.0
        %1047 = vmatpush2.xpose.msra.mxu0 0.0
        %1048 = vmatprep.subr.mxu0 0.0
        %1049 = vmatpush2.xpose.msra.mxu0 0.0
        %1050 = vmatprep.subr.mxu0 0.0
        %1051 = vmatpush2.xpose.msra.mxu0 0.0
        %1052 = vmatprep.subr.mxu0 0.0
        %1053 = vmatpush2.xpose.msra.mxu0 0.0
        %1054 = vmatprep.subr.mxu0 0.0
        %1055 = vmatpush2.xpose.msra.mxu0 0.0
        %1056 = vmatprep.subr.mxu0 0.0
        %1057 = vmatpush2.xpose.msra.mxu0 0.0
        %1058 = vmatprep.subr.mxu0 0.0
        %1059 = vmatpush2.xpose.msra.mxu0 0.0
        %1060 = vmatprep.subr.mxu0 0.0
        %1061 = vmatpush2.xpose.msra.mxu0 0.0
        %1062 = vmatprep.subr.mxu0 0.0
        %1063 = vmatpush2.xpose.msra.mxu0 0.0
        %1064 = vmatprep.subr.mxu0 0.0
        %1065 = vmatpush2.xpose.msra.mxu0 0.0
        %1066 = vmatprep.subr.mxu0 0.0
        %1067 = vmatpush2.xpose.msra.mxu0 0.0
        %1068 = vmatprep.subr.mxu0 0.0
        %1069 = vmatpush2.xpose.msra.mxu0 0.0
        %1070 = vmatprep.subr.mxu0 0.0
        %1071 = vmatpush2.xpose.msra.mxu0 0.0
        %1072 = vmatprep.subr.mxu0 0.0
        %1073 = vmatpush2.xpose.msra.mxu0 0.0
        %1074 = vmatprep.mubr.f32.mxu0 0.0
        %1075 = vmatmul.mubr.f32.gmra.mxu0 %v1006
        %v1076 = vpop.f32.mrf.mxu0
        %v1077 = vadd.f32 0.0, %v1076
        %v1078 = vpop.f32.mrf.mxu0
        %1079 = vdwg.mxu0
        %v1080 = vsel %vm487, %v1077, -inf
        %1081 = vmax.xlane.f32.xlu0 %v1080
        %v1082 = vpop.xlane.xlu0 %1081
        %v1083 = vsub.f32 %v1077, %v1082
        %v1084 = vmul.f32 %v1083, 1.442695
        %v1085 = vpow.pop %v1084
        %v1086 = vsel %vm487, %v1085, 0.0
        %1087 = vadd.xlane.f32.xlu0 %v1086
        %v1088 = vpop.xlane.xlu0 %1087
        %v1089 = vrcp.pop %v1088
        %v1090 = vmul.f32 %v1085, %v1089
        %1092 = vrot.lane.b32.xlu0 %v1000, 104
        %v1093 = vpop.permute.xlu0 %1092
        %v1096 = vsel %vm487, %v1090, 0
        %1098 = vmatprep.subr.mxu0 0.0
        %1099 = vmatpush1.msra.mxu0 0.0
        %1100 = vmatprep.subr.mxu0 0.0
        %1101 = vmatpush1.msra.mxu0 0.0
        %1102 = vmatprep.subr.mxu0 0.0
        %1103 = vmatpush1.msra.mxu0 0.0
        %1104 = vmatprep.subr.mxu0 0.0
        %1105 = vmatpush1.msra.mxu0 0.0
        %1106 = vmatprep.subr.mxu0 0.0
        %1107 = vmatpush1.msra.mxu0 0.0
        %1108 = vmatprep.subr.mxu0 0.0
        %1109 = vmatpush1.msra.mxu0 0.0
        %1110 = vmatprep.subr.mxu0 0.0
        %1111 = vmatpush1.msra.mxu0 0.0
        %1112 = vmatprep.subr.mxu0 0.0
        %1113 = vmatpush1.msra.mxu0 0.0
        %1114 = vmatprep.subr.mxu0 0.0
        %1115 = vmatpush1.msra.mxu0 0.0
        %1116 = vmatprep.subr.mxu0 0.0
        %1117 = vmatpush1.msra.mxu0 0.0
        %1118 = vmatprep.subr.mxu0 0.0
        %1119 = vmatpush1.msra.mxu0 0.0
        %1120 = vmatprep.subr.mxu0 0.0
        %1121 = vmatpush1.msra.mxu0 0.0
        %1122 = vmatprep.subr.mxu0 0.0
        %1123 = vmatpush1.msra.mxu0 0.0
        %1124 = vmatprep.subr.mxu0 0.0
        %1125 = vmatpush1.msra.mxu0 0.0
        %1126 = vmatprep.subr.mxu0 0.0
        %1127 = vmatpush1.msra.mxu0 0.0
        %1128 = vmatprep.subr.mxu0 0.0
        %1129 = vmatpush1.msra.mxu0 %v1093
        %1130 = vmatprep.subr.mxu0 0.0
        %1131 = vmatpush2.msra.mxu0 0.0
        %1132 = vmatprep.subr.mxu0 0.0
        %1133 = vmatpush2.msra.mxu0 0.0
        %1134 = vmatprep.subr.mxu0 0.0
        %1135 = vmatpush2.msra.mxu0 0.0
        %1136 = vmatprep.subr.mxu0 0.0
        %1137 = vmatpush2.msra.mxu0 0.0
        %1138 = vmatprep.subr.mxu0 0.0
        %1139 = vmatpush2.msra.mxu0 0.0
        %1140 = vmatprep.subr.mxu0 0.0
        %1141 = vmatpush2.msra.mxu0 0.0
        %1142 = vmatprep.subr.mxu0 0.0
        %1143 = vmatpush2.msra.mxu0 0.0
        %1144 = vmatprep.subr.mxu0 0.0
        %1145 = vmatpush2.msra.mxu0 0.0
        %1146 = vmatprep.subr.mxu0 0.0
        %1147 = vmatpush2.msra.mxu0 0.0
        %1148 = vmatprep.subr.mxu0 0.0
        %1149 = vmatpush2.msra.mxu0 0.0
        %1150 = vmatprep.subr.mxu0 0.0
        %1151 = vmatpush2.msra.mxu0 0.0
        %1152 = vmatprep.subr.mxu0 0.0
        %1153 = vmatpush2.msra.mxu0 0.0
        %1154 = vmatprep.subr.mxu0 0.0
        %1155 = vmatpush2.msra.mxu0 0.0
        %1156 = vmatprep.subr.mxu0 0.0
        %1157 = vmatpush2.msra.mxu0 0.0
        %1158 = vmatprep.subr.mxu0 0.0
        %1159 = vmatpush2.msra.mxu0 0.0
        %1160 = vmatprep.subr.mxu0 0.0
        %1161 = vmatpush2.msra.mxu0 0.0
        %1162 = vmatprep.mubr.f32.mxu0 0.0
        %1163 = vmatmul.mubr.f32.gmra.mxu0 %v1096
        %v1164 = vpop.f32.mrf.mxu0
        %v1165 = vadd.f32 0.0, %v1164
        %v1166 = vpop.f32.mrf.mxu0
        %1167 = vdwg.mxu0
        %1169 = vrot.lane.b32.xlu0 %v1165, 24
        %v1170 = vpop.permute.xlu0 %1169
        %vm1172 = vcmask 261312
        %1173 = vst.msk [vmem:[#allocation4] sm:$0xff] %vm1172, %v1170
        %v1174 = vld [vmem:[#allocation4] sm:$0xff]
        %v1175 = vld [vmem:[#allocation10] sm:$0xff]
        %v1176 = vld [vmem:[#allocation10 + $0x8] sm:$0xff]
        %v1177 = vld [vmem:[#allocation10 + $0x10] sm:$0xff]
        %v1178 = vld [vmem:[#allocation10 + $0x18] sm:$0xff]
        %v1179 = vld [vmem:[%s4] sm:$0x1]
        %v1181 = vlaneseq
        %v1182 = vshrl.u32 %v1181, 7
        %v1183 = vsub.s32 0, %v1182
        %v1184 = vrot.slane %v1179, %v1183
        %v1187 = vsel %vm411, %v1174, 0
        %1189 = vmatprep.subr.mxu0 0.0
        %1190 = vmatpush1.msra.mxu0 0.0
        %1191 = vmatprep.subr.mxu0 0.0
        %1192 = vmatpush1.msra.mxu0 0.0
        %1193 = vmatprep.subr.mxu0 0.0
        %1194 = vmatpush1.msra.mxu0 0.0
        %1195 = vmatprep.subr.mxu0 0.0
        %1196 = vmatpush1.msra.mxu0 0.0
        %1197 = vmatprep.subr.mxu0 0.0
        %1198 = vmatpush1.msra.mxu0 0.0
        %1199 = vmatprep.subr.mxu0 0.0
        %1200 = vmatpush1.msra.mxu0 0.0
        %1201 = vmatprep.subr.mxu0 0.0
        %1202 = vmatpush1.msra.mxu0 0.0
        %1203 = vmatprep.subr.mxu0 0.0
        %1204 = vmatpush1.msra.mxu0 0.0
        %1205 = vmatprep.subr.mxu0 0.0
        %1206 = vmatpush1.msra.mxu0 0.0
        %1207 = vmatprep.subr.mxu0 0.0
        %1208 = vmatpush1.msra.mxu0 0.0
        %1209 = vmatprep.subr.mxu0 0.0
        %1210 = vmatpush1.msra.mxu0 0.0
        %1211 = vmatprep.subr.mxu0 0.0
        %1212 = vmatpush1.msra.mxu0 0.0
        %1213 = vmatprep.subr.mxu0 0.0
        %1214 = vmatpush1.msra.mxu0 %v1178
        %1215 = vmatprep.subr.mxu0 0.0
        %1216 = vmatpush1.msra.mxu0 %v1177
        %1217 = vmatprep.subr.mxu0 0.0
        %1218 = vmatpush1.msra.mxu0 %v1176
        %1219 = vmatprep.subr.mxu0 0.0
        %1220 = vmatpush1.msra.mxu0 %v1175
        %1221 = vmatprep.subr.mxu0 0.0
        %1222 = vmatpush2.msra.mxu0 0.0
        %1223 = vmatprep.subr.mxu0 0.0
        %1224 = vmatpush2.msra.mxu0 0.0
        %1225 = vmatprep.subr.mxu0 0.0
        %1226 = vmatpush2.msra.mxu0 0.0
        %1227 = vmatprep.subr.mxu0 0.0
        %1228 = vmatpush2.msra.mxu0 0.0
        %1229 = vmatprep.subr.mxu0 0.0
        %1230 = vmatpush2.msra.mxu0 0.0
        %1231 = vmatprep.subr.mxu0 0.0
        %1232 = vmatpush2.msra.mxu0 0.0
        %1233 = vmatprep.subr.mxu0 0.0
        %1234 = vmatpush2.msra.mxu0 0.0
        %1235 = vmatprep.subr.mxu0 0.0
        %1236 = vmatpush2.msra.mxu0 0.0
        %1237 = vmatprep.subr.mxu0 0.0
        %1238 = vmatpush2.msra.mxu0 0.0
        %1239 = vmatprep.subr.mxu0 0.0
        %1240 = vmatpush2.msra.mxu0 0.0
        %1241 = vmatprep.subr.mxu0 0.0
        %1242 = vmatpush2.msra.mxu0 0.0
        %1243 = vmatprep.subr.mxu0 0.0
        %1244 = vmatpush2.msra.mxu0 0.0
        %1245 = vmatprep.subr.mxu0 0.0
        %1246 = vmatpush2.msra.mxu0 0.0
        %1247 = vmatprep.subr.mxu0 0.0
        %1248 = vmatpush2.msra.mxu0 0.0
        %1249 = vmatprep.subr.mxu0 0.0
        %1250 = vmatpush2.msra.mxu0 0.0
        %1251 = vmatprep.subr.mxu0 0.0
        %1252 = vmatpush2.msra.mxu0 0.0
        %1253 = vmatprep.mubr.f32.mxu0 0.0
        %1254 = vmatmul.mubr.f32.gmra.mxu0 %v1187
        %v1255 = vpop.f32.mrf.mxu0
        %v1256 = vadd.f32 %v1184, %v1255
        %v1257 = vpop.f32.mrf.mxu0
        %1258 = vdwg.mxu0
        %1259 = vst.msk [vmem:[%s282] sm:$0xff] %vm411, %v1256
        %s1260 = sand.u32 %s155, 1
        %s1261 = scalar_lea.sflag [#allocation7], %s1260
        %s1262 = sand.u32 %s155, 1
        %s1263 = smul.addr %s1262, 8
        %s1264 = scalar_lea.vmem [#allocation11], %s1263
        // Predicated region
        $region57: #{tpu_custom_call.1} parent=39 // pred_check
          %p1265 = pneg %p165
        $region58: #{tpu_custom_call.1} parent=39 // pred_check_branch
          %1267 = sbr.rel (%p1265) target = $region60
        $region59: #{tpu_custom_call.1} parent=39 // pred_region
          %s1269 = ssub.s32 128, 128
          %1270 = vsyncadd %s1261, %s1269
          %s1271 = sadd.s32 %s28, %s27
          %s1272 = smul.addr %s1271, 128
          %s1273 = scalar_lea.hbm %s5, %s1272
          %s1275 = sshll.u32 %s1264, 4
          %s1276 = int_to_ptr.vmem [resolvable:$true] %s1275
          %1278 = dma.vmem_to_hbm [thread:$0]  %s1276, 128, %s1273, %s1261
        $region60: #{tpu_custom_call.1} parent=39 // pred_fallthru
          _
      $region40: #{tpu_custom_call.1} parent=5 // pred_fallthru
        _
      %p1279 = scmp.le.s32.totalorder 2, %s18
      // Predicated region
      $region61: #{tpu_custom_call.1} parent=5 // pred_check
        %p1280 = pneg %p1279
      $region62: #{tpu_custom_call.1} parent=5 // pred_check_branch
        %1282 = sbr.rel (%p1280) target = $region64
      $region63: #{tpu_custom_call.1} parent=5 // pred_region
        %s1283 = ssub.s32 %s18, 2
        // Predicated region
        $region65: #{tpu_custom_call.1} parent=63 // pred_check
          %p1284 = pneg %p171
        $region66: #{tpu_custom_call.1} parent=63 // pred_check_branch
          %1286 = sbr.rel (%p1284) target = $region68
        $region67: #{tpu_custom_call.1} parent=63 // pred_region
          %s1287 = sand.u32 %s156, 1
          %s1288 = scalar_lea.sflag [#allocation7], %s1287
          %s1289 = sand.u32 %s156, 1
          %s1290 = smul.addr %s1289, 8
          %s1291 = scalar_lea.vmem [#allocation11], %s1290
          %1292 = dma.done %s1288, 128
        $region68: #{tpu_custom_call.1} parent=63 // pred_fallthru
          _
      $region64: #{tpu_custom_call.1} parent=5 // pred_fallthru
        _
    $region6: #{tpu_custom_call.1} parent=1 // loop_footer
      %s22 = sadd.s32 1, %s18
    $region7: #{tpu_custom_call.1} parent=1 // loop_footer_branch
      %17 = sbr.rel target = $region3
    $region8: #{tpu_custom_call.1} parent=1 // loop_exit
      _
    %1293 = vsyncpa [#allocation6], 1
    %s1294 = scalar_lea.sflag [#allocation6], 1
    %1295 = vsyncpa %s1294, 1
    %1296 = vsyncpa [#allocation9], 1
    %1297 = vsyncpa [#allocation7], 1
    %s1298 = scalar_lea.sflag [#allocation7], 1
    %1299 = vsyncpa %s1298, 1

</llo_original>
